<compile_context>
chip_gen: v5e
topology: v5e:2x2
jax: 0.10.0
libtpu: 0.0.40
codegen_flags: <defaults>
</compile_context>

<pallas_src>
import jax
import jax.numpy as jnp
from jax.experimental import pallas as pl
from jax.experimental.pallas import tpu as pltpu

# ---------------------------------------------------------------------------
# config (small shapes consistent with the module)
# ---------------------------------------------------------------------------
BATCH = 2
IMG_C = 3
IMG_H = 64
IMG_W = 64
SHUFFLE_PATCH = 32              # F.unfold(..., kernel_size=32, stride=32)
SHUFFLE_TIMES = 3
NUM_VIEWS = SHUFFLE_TIMES + 1   # 3 shuffled views + 1 original
FEAT_DIM = 128                  # CHANNELS['MOCO']
NUM_CLASSES = 1
CLS_PAD = 128                   # lane-dense logits slab (real logits = first column)

ENC_PATCH = 16                                  # stand-in encoder patch size
ENC_PDIM = IMG_C * ENC_PATCH * ENC_PATCH        # 768
N_SH = IMG_H // SHUFFLE_PATCH                   # 2 shuffle patches per side
L_SH = N_SH * N_SH                              # 4 shuffle patches per image
SUB_SIDE = SHUFFLE_PATCH // ENC_PATCH           # 2 encoder patches per shuffle-patch side
SUB = SUB_SIDE * SUB_SIDE                       # 4 encoder patches per shuffle patch
ENC_NPATCH = L_SH * SUB                         # 16 encoder patches per image
ROWS_TOTAL = BATCH * NUM_VIEWS * ENC_NPATCH     # 128 patch rows (all batch elems, all views)


# ---------------------------------------------------------------------------
# Single fused kernel: encoder for ALL views + attention head + classifier.
# Patch rows are ordered (batch, view, shuffle-patch, sub-patch).
# ---------------------------------------------------------------------------
def _fused_kernel(x_ref, w1_ref, biaspos_ref, w2_ref, b2_ref,
                  wqkv_ref, wo_ref, wc_ref, bc_ref, out_ref):
    # ---- stand-in frozen encoder, all views at once -------------------------
    h = jnp.dot(x_ref[...], w1_ref[...],
                preferred_element_type=jnp.float32)                # (128, 128) f32
    h = jnp.maximum(h + biaspos_ref[...], 0.0)                     # bias + pos emb, ReLU
    # mean-pool the 16 encoder patches of each (batch, view) token (XLU reduce)
    pooled = jnp.mean(
        h.reshape(BATCH * NUM_VIEWS, ENC_NPATCH, FEAT_DIM), axis=1)  # (8, 128)
    feat = jnp.dot(pooled.astype(jnp.bfloat16), w2_ref[...],
                   preferred_element_type=jnp.float32) + b2_ref[...]  # (8, 128), rows = (b, v)

    # ---- attention head (single-head self-attn over the view axis) ----------
    tok = feat.astype(jnp.bfloat16)                                 # (8, 128)
    qkv = jnp.dot(tok, wqkv_ref[...],
                  preferred_element_type=jnp.float32)               # (8, 384)
    q = qkv[:, :FEAT_DIM].reshape(BATCH, NUM_VIEWS, FEAT_DIM)
    k = qkv[:, FEAT_DIM:2 * FEAT_DIM].reshape(BATCH, NUM_VIEWS, FEAT_DIM)
    val = qkv[:, 2 * FEAT_DIM:].reshape(BATCH, NUM_VIEWS, FEAT_DIM)

    scale = 1.0 / (FEAT_DIM ** 0.5)
    s = jnp.einsum("bie,bje->bij", q, k,
                   preferred_element_type=jnp.float32) * scale      # (B, V, V)
    s = s - jnp.max(s, axis=-1, keepdims=True)
    p = jnp.exp(s)
    p = p / jnp.sum(p, axis=-1, keepdims=True)                      # exact softmax
    ctx = jnp.einsum("bij,bje->bie", p, val,
                     preferred_element_type=jnp.float32)            # (B, V, D)

    o = jnp.dot(ctx.reshape(BATCH * NUM_VIEWS, FEAT_DIM).astype(jnp.bfloat16),
                wo_ref[...], preferred_element_type=jnp.float32)    # (8, 128)
    o = o + feat                                                    # residual, (b, v) rows
    pooled_t = jnp.mean(o.reshape(BATCH, NUM_VIEWS, FEAT_DIM), axis=1)   # (B, D)

    # ---- classifier (lane-dense padded output) ------------------------------
    logits = jnp.dot(pooled_t.astype(jnp.bfloat16), wc_ref[...],
                     preferred_element_type=jnp.float32) + bc_ref[...]   # (B, 128)
    out_ref[...] = logits.astype(out_ref.dtype)


# ---------------------------------------------------------------------------
# Forward (mirrors MOCOModel_v1_ShuffleAttention.forward)
# ---------------------------------------------------------------------------
def moco_forward(x, perms, params):
    # One-time re-layout of the ORIGINAL image into per-(batch, shuffle-patch,
    # sub-patch) encoder rows, then one tiny jnp.take applies every view's
    # patch permutation (destination patch l of view v reads source perms[v, l]).
    patches = (
        x.reshape(BATCH, IMG_C, N_SH, SUB_SIDE, ENC_PATCH, N_SH, SUB_SIDE, ENC_PATCH)
         .transpose(0, 2, 5, 3, 6, 1, 4, 7)          # (B, lH, lW, sh, sw, C, ph, pw)
         .reshape(BATCH, L_SH, SUB, ENC_PDIM)
    )
    xg = jnp.take(patches, perms, axis=1)             # (B, V, L, SUB, 768)
    xg = xg.reshape(ROWS_TOTAL, ENC_PDIM).astype(jnp.bfloat16)   # (128, 768) bf16

    vmem = pl.BlockSpec(memory_space=pltpu.MemorySpace.VMEM)
    out = pl.pallas_call(
        _fused_kernel,
        out_shape=jax.ShapeDtypeStruct((BATCH, CLS_PAD), jnp.float32),
        in_specs=[vmem] * 9,
        out_specs=vmem,
    )(xg,
      params["enc_w1"], params["biaspos"], params["enc_w2"], params["enc_b2"],
      params["wqkv"], params["wo"], params["wc_pad"], params["bc_pad"])

    return out[:, :NUM_CLASSES]


# ---------------------------------------------------------------------------
# Parameter init (deterministic, in-script)
# ---------------------------------------------------------------------------
def init_params(key):
    ks = jax.random.split(key, 8)
    n = lambda k, shape, s=0.02: (s * jax.random.normal(k, shape)).astype(jnp.float32)

    w1 = n(ks[0], (ENC_PDIM, FEAT_DIM))
    b1 = jnp.zeros((FEAT_DIM,), jnp.float32)
    pos = n(ks[1], (ENC_NPATCH, FEAT_DIM))    # positional emb: makes the shuffle observable
    w2 = n(ks[2], (FEAT_DIM, FEAT_DIM))
    b2 = jnp.zeros((1, FEAT_DIM), jnp.float32)
    wq = n(ks[3], (FEAT_DIM, FEAT_DIM))
    wk = n(ks[4], (FEAT_DIM, FEAT_DIM))
    wv = n(ks[5], (FEAT_DIM, FEAT_DIM))
    wo = n(ks[6], (FEAT_DIM, FEAT_DIM))
    wc = n(ks[7], (FEAT_DIM, NUM_CLASSES))
    bc = jnp.zeros((NUM_CLASSES,), jnp.float32)

    # bias + destination-position embedding per patch row; same pattern for every
    # (batch, view) token, tiled to the full (128, 128) row slab.
    bias_block = b1[None, :] + pos                                  # (16, 128)
    biaspos = jnp.tile(bias_block, (BATCH * NUM_VIEWS, 1))          # (128, 128)

    wc_pad = jnp.zeros((FEAT_DIM, CLS_PAD), jnp.float32).at[:, :NUM_CLASSES].set(wc)
    bc_pad = jnp.zeros((1, CLS_PAD), jnp.float32).at[:, :NUM_CLASSES].set(bc[None, :])

    return {
        "enc_w1": w1.astype(jnp.bfloat16),
        "biaspos": biaspos.astype(jnp.bfloat16),
        "enc_w2": w2.astype(jnp.bfloat16),
        "enc_b2": b2,
        "wqkv": jnp.concatenate([wq, wk, wv], axis=1).astype(jnp.bfloat16),
        "wo": wo.astype(jnp.bfloat16),
        "wc_pad": wc_pad.astype(jnp.bfloat16),
        "bc_pad": bc_pad,
    }


if __name__ == "__main__":
    key = jax.random.PRNGKey(0)
    k_x, k_p, k_perm = jax.random.split(key, 3)

    x = jax.random.normal(k_x, (BATCH, IMG_C, IMG_H, IMG_W), dtype=jnp.float32)
    params = init_params(k_p)

    # deterministic stand-in for torch.randperm (one permutation per shuffle
    # iteration); the last view uses the identity permutation = un-shuffled x.
    perm_keys = jax.random.split(k_perm, SHUFFLE_TIMES)
    perm_rows = [jax.random.permutation(perm_keys[i], L_SH).astype(jnp.int32)
                 for i in range(SHUFFLE_TIMES)]
    perm_rows.append(jnp.arange(L_SH, dtype=jnp.int32))
    perms = jnp.stack(perm_rows, axis=0)                 # (NUM_VIEWS, L_SH)

    fwd = jax.jit(moco_forward)
    out = jax.block_until_ready(fwd(x, perms, params))
    assert out.shape == (BATCH, NUM_CLASSES), out.shape
    assert bool(jnp.all(jnp.isfinite(out)))
    print("KERNEL_OK")
</pallas_src>

<mosaic_0001>
module attributes {stable_mosaic.version = 11 : i64} {
  func.func @_fused_kernel(%arg0: memref<128x768xbf16, #tpu.memory_space<vmem>>, %arg1: memref<768x128xbf16, #tpu.memory_space<vmem>>, %arg2: memref<128x128xbf16, #tpu.memory_space<vmem>>, %arg3: memref<128x128xbf16, #tpu.memory_space<vmem>>, %arg4: memref<1x128xf32, #tpu.memory_space<vmem>>, %arg5: memref<128x384xbf16, #tpu.memory_space<vmem>>, %arg6: memref<128x128xbf16, #tpu.memory_space<vmem>>, %arg7: memref<128x128xbf16, #tpu.memory_space<vmem>>, %arg8: memref<1x128xf32, #tpu.memory_space<vmem>>, %arg9: memref<2x128xf32, #tpu.memory_space<vmem>>) attributes {dimension_semantics = [], scalar_prefetch = 0 : i64, scratch_operands = 0 : i64, tpu.core_type = #tpu.core_type<tc>} {
    %c0 = arith.constant 0 : index
    %c0_0 = arith.constant 0 : index
    %0 = vector.load %arg0[%c0, %c0_0] : memref<128x768xbf16, #tpu.memory_space<vmem>>, vector<128x768xbf16>
    %c0_1 = arith.constant 0 : index
    %c0_2 = arith.constant 0 : index
    %1 = vector.load %arg1[%c0_1, %c0_2] : memref<768x128xbf16, #tpu.memory_space<vmem>>, vector<768x128xbf16>
    %cst = arith.constant dense<0.000000e+00> : vector<128x128xf32>
    %2 = tpu.matmul %0, %1, %cst {dimension_numbers = #tpu.dot_dimension_numbers<[1], [0], [0], [1], [0, 0, 1, 1], [], []>} : vector<128x768xbf16>, vector<768x128xbf16>, vector<128x128xf32> -> vector<128x128xf32>
    %c0_3 = arith.constant 0 : index
    %c0_4 = arith.constant 0 : index
    %3 = vector.load %arg2[%c0_3, %c0_4] : memref<128x128xbf16, #tpu.memory_space<vmem>>, vector<128x128xbf16>
    %4 = arith.extf %3 : vector<128x128xbf16> to vector<128x128xf32>
    %5 = arith.addf %2, %4 : vector<128x128xf32>
    %cst_5 = arith.constant 0.000000e+00 : f32
    %6 = vector.broadcast %cst_5 : f32 to vector<128x128xf32>
    %7 = arith.maximumf %5, %6 : vector<128x128xf32>
    %8 = vector.shape_cast %7 : vector<128x128xf32> to vector<8x16x128xf32>
    %cst_6 = arith.constant dense<0.000000e+00> : vector<8x128xf32>
    %9 = vector.multi_reduction <add>, %8, %cst_6 [1] : vector<8x16x128xf32> to vector<8x128xf32>
    %cst_7 = arith.constant 1.600000e+01 : f32
    %10 = vector.broadcast %cst_7 : f32 to vector<8x128xf32>
    %11 = arith.divf %9, %10 : vector<8x128xf32>
    %12 = arith.truncf %11 : vector<8x128xf32> to vector<8x128xbf16>
    %c0_8 = arith.constant 0 : index
    %c0_9 = arith.constant 0 : index
    %13 = vector.load %arg3[%c0_8, %c0_9] : memref<128x128xbf16, #tpu.memory_space<vmem>>, vector<128x128xbf16>
    %cst_10 = arith.constant dense<0.000000e+00> : vector<8x128xf32>
    %14 = tpu.matmul %12, %13, %cst_10 {dimension_numbers = #tpu.dot_dimension_numbers<[1], [0], [0], [1], [0, 0, 1, 1], [], []>} : vector<8x128xbf16>, vector<128x128xbf16>, vector<8x128xf32> -> vector<8x128xf32>
    %c0_11 = arith.constant 0 : index
    %c0_12 = arith.constant 0 : index
    %15 = vector.load %arg4[%c0_11, %c0_12] : memref<1x128xf32, #tpu.memory_space<vmem>>, vector<1x128xf32>
    %16 = vector.broadcast %15 : vector<1x128xf32> to vector<8x128xf32>
    %17 = arith.addf %14, %16 : vector<8x128xf32>
    %18 = arith.truncf %17 : vector<8x128xf32> to vector<8x128xbf16>
    %c0_13 = arith.constant 0 : index
    %c0_14 = arith.constant 0 : index
    %19 = vector.load %arg5[%c0_13, %c0_14] : memref<128x384xbf16, #tpu.memory_space<vmem>>, vector<128x384xbf16>
    %cst_15 = arith.constant dense<0.000000e+00> : vector<8x384xf32>
    %20 = tpu.matmul %18, %19, %cst_15 {dimension_numbers = #tpu.dot_dimension_numbers<[1], [0], [0], [1], [0, 0, 1, 1], [], []>} : vector<8x128xbf16>, vector<128x384xbf16>, vector<8x384xf32> -> vector<8x384xf32>
    %21 = vector.extract_strided_slice %20 {offsets = [0, 0], sizes = [8, 128], strides = [1, 1]} : vector<8x384xf32> to vector<8x128xf32>
    %22 = vector.shape_cast %21 : vector<8x128xf32> to vector<2x4x128xf32>
    %23 = vector.extract_strided_slice %20 {offsets = [0, 128], sizes = [8, 128], strides = [1, 1]} : vector<8x384xf32> to vector<8x128xf32>
    %24 = vector.shape_cast %23 : vector<8x128xf32> to vector<2x4x128xf32>
    %25 = vector.extract_strided_slice %20 {offsets = [0, 256], sizes = [8, 128], strides = [1, 1]} : vector<8x384xf32> to vector<8x128xf32>
    %26 = vector.shape_cast %25 : vector<8x128xf32> to vector<2x4x128xf32>
    "tpu.trace_start"() <{level = 10 : i32, message = "bie,bje->bij"}> : () -> ()
    %cst_16 = arith.constant dense<0.000000e+00> : vector<2x4x4xf32>
    %27 = tpu.matmul %22, %24, %cst_16 {dimension_numbers = #tpu.dot_dimension_numbers<[2], [2], [1], [1], [0, 0, 0, 1, 1, 1], [0], [0]>} : vector<2x4x128xf32>, vector<2x4x128xf32>, vector<2x4x4xf32> -> vector<2x4x4xf32>
    "tpu.trace_stop"() : () -> ()
    %cst_17 = arith.constant 0.0883883461 : f32
    %28 = vector.broadcast %cst_17 : f32 to vector<2x4x4xf32>
    %29 = arith.mulf %27, %28 : vector<2x4x4xf32>
    %cst_18 = arith.constant dense<0xFF800000> : vector<2x4xf32>
    %30 = vector.multi_reduction <maximumf>, %29, %cst_18 [2] : vector<2x4x4xf32> to vector<2x4xf32>
    %31 = vector.shape_cast %30 : vector<2x4xf32> to vector<2x4x1xf32>
    %32 = vector.broadcast %31 : vector<2x4x1xf32> to vector<2x4x4xf32>
    %33 = arith.subf %29, %32 : vector<2x4x4xf32>
    %34 = math.exp %33 : vector<2x4x4xf32>
    %cst_19 = arith.constant dense<0.000000e+00> : vector<2x4xf32>
    %35 = vector.multi_reduction <add>, %34, %cst_19 [2] : vector<2x4x4xf32> to vector<2x4xf32>
    %36 = vector.shape_cast %35 : vector<2x4xf32> to vector<2x4x1xf32>
    %37 = vector.broadcast %36 : vector<2x4x1xf32> to vector<2x4x4xf32>
    %38 = arith.divf %34, %37 : vector<2x4x4xf32>
    "tpu.trace_start"() <{level = 10 : i32, message = "bij,bje->bie"}> : () -> ()
    %cst_20 = arith.constant dense<0.000000e+00> : vector<2x4x128xf32>
    %39 = tpu.matmul %38, %26, %cst_20 {dimension_numbers = #tpu.dot_dimension_numbers<[2], [1], [1], [2], [0, 0, 0, 1, 1, 2], [0], [0]>} : vector<2x4x4xf32>, vector<2x4x128xf32>, vector<2x4x128xf32> -> vector<2x4x128xf32>
    "tpu.trace_stop"() : () -> ()
    %40 = vector.shape_cast %39 : vector<2x4x128xf32> to vector<8x128xf32>
    %41 = arith.truncf %40 : vector<8x128xf32> to vector<8x128xbf16>
    %c0_21 = arith.constant 0 : index
    %c0_22 = arith.constant 0 : index
    %42 = vector.load %arg6[%c0_21, %c0_22] : memref<128x128xbf16, #tpu.memory_space<vmem>>, vector<128x128xbf16>
    %cst_23 = arith.constant dense<0.000000e+00> : vector<8x128xf32>
    %43 = tpu.matmul %41, %42, %cst_23 {dimension_numbers = #tpu.dot_dimension_numbers<[1], [0], [0], [1], [0, 0, 1, 1], [], []>} : vector<8x128xbf16>, vector<128x128xbf16>, vector<8x128xf32> -> vector<8x128xf32>
    %44 = arith.addf %43, %17 : vector<8x128xf32>
    %45 = vector.shape_cast %44 : vector<8x128xf32> to vector<2x4x128xf32>
    %cst_24 = arith.constant dense<0.000000e+00> : vector<2x128xf32>
    %46 = vector.multi_reduction <add>, %45, %cst_24 [1] : vector<2x4x128xf32> to vector<2x128xf32>
    %cst_25 = arith.constant 4.000000e+00 : f32
    %47 = vector.broadcast %cst_25 : f32 to vector<2x128xf32>
    %48 = arith.divf %46, %47 : vector<2x128xf32>
    %49 = arith.truncf %48 : vector<2x128xf32> to vector<2x128xbf16>
    %c0_26 = arith.constant 0 : index
    %c0_27 = arith.constant 0 : index
    %50 = vector.load %arg7[%c0_26, %c0_27] : memref<128x128xbf16, #tpu.memory_space<vmem>>, vector<128x128xbf16>
    %cst_28 = arith.constant dense<0.000000e+00> : vector<2x128xf32>
    %51 = tpu.matmul %49, %50, %cst_28 {dimension_numbers = #tpu.dot_dimension_numbers<[1], [0], [0], [1], [0, 0, 1, 1], [], []>} : vector<2x128xbf16>, vector<128x128xbf16>, vector<2x128xf32> -> vector<2x128xf32>
    %c0_29 = arith.constant 0 : index
    %c0_30 = arith.constant 0 : index
    %52 = vector.load %arg8[%c0_29, %c0_30] : memref<1x128xf32, #tpu.memory_space<vmem>>, vector<1x128xf32>
    %53 = vector.broadcast %52 : vector<1x128xf32> to vector<2x128xf32>
    %54 = arith.addf %51, %53 : vector<2x128xf32>
    %c0_31 = arith.constant 0 : index
    %c0_32 = arith.constant 0 : index
    %55 = vector.load %arg9[%c0_31, %c0_32] : memref<2x128xf32, #tpu.memory_space<vmem>>, vector<2x128xf32>
    tpu.vector_store %arg9[%c0_31, %c0_32], %54 {strides = array<i32>} : memref<2x128xf32, #tpu.memory_space<vmem>>, vector<2x128xf32>,
    return
  }
}

</mosaic_0001>

<llo_original>
// kernel: moco_forward.1
$region0: #{moco_forward.1}
  #allocation0 [shape = 'u32[]', space=smem, size = 0x4, offset = 0x4, fixed_abs, tag = 'smem constant byte address 0x4 - core index']
  #allocation1 [shape = 'u32[72,128]{1,0:T(1,128)}', space=vmem, size = 0x9000, scoped, tag = 'internal scratch']
  %s0 = inlined_call_operand.vmem [shape: bf16[128,768], index: 0, kind: input, shape index: {}]
  %s1 = inlined_call_operand.vmem [shape: bf16[768,128], index: 1, kind: input, shape index: {}]
  %s2 = inlined_call_operand.vmem [shape: bf16[128,128], index: 2, kind: input, shape index: {}]
  %s3 = inlined_call_operand.vmem [shape: bf16[128,128], index: 3, kind: input, shape index: {}]
  %s4 = inlined_call_operand.vmem [shape: f32[1,128], index: 4, kind: input, shape index: {}]
  %s5 = inlined_call_operand.vmem [shape: bf16[128,384], index: 5, kind: input, shape index: {}]
  %s6 = inlined_call_operand.vmem [shape: bf16[128,128], index: 6, kind: input, shape index: {}]
  %s7 = inlined_call_operand.vmem [shape: bf16[128,128], index: 7, kind: input, shape index: {}]
  %s8 = inlined_call_operand.vmem [shape: f32[1,128], index: 8, kind: input, shape index: {}]
  %s9 = inlined_call_operand.vmem [shape: f32[2,128], index: 9, kind: output, shape index: {}]
  %s10 = sld [smem:[#allocation0]]
  $region46: #{moco_forward.1} parent=0
    _
  %s12 = ssub.s32 1, %s10
  %s13 = scalar_select 0, %s12, %s10
  // Predicated region
  $region2: #{moco_forward.1} parent=0 // pred_check
    _
  $region3: #{moco_forward.1} parent=0 // pred_check_branch
    %15 = sbr.rel (0) target = $region5
  $region4: #{moco_forward.1} parent=0 // pred_region
    _
  $region5: #{moco_forward.1} parent=0 // pred_fallthru
    _
  // Predicated region
  $region6: #{moco_forward.1} parent=0 // pred_check
    _
  $region7: #{moco_forward.1} parent=0 // pred_check_branch
    %17 = sbr.rel (0) target = $region9
  $region8: #{moco_forward.1} parent=0 // pred_region
    _
  $region9: #{moco_forward.1} parent=0 // pred_fallthru
    _
  // Predicated region
  $region10: #{moco_forward.1} parent=0 // pred_check
    _
  $region11: #{moco_forward.1} parent=0 // pred_check_branch
    %19 = sbr.rel (0) target = $region13
  $region12: #{moco_forward.1} parent=0 // pred_region
    _
  $region13: #{moco_forward.1} parent=0 // pred_fallthru
    _
  // Predicated region
  $region14: #{moco_forward.1} parent=0 // pred_check
    _
  $region15: #{moco_forward.1} parent=0 // pred_check_branch
    %21 = sbr.rel (0) target = $region17
  $region16: #{moco_forward.1} parent=0 // pred_region
    _
  $region17: #{moco_forward.1} parent=0 // pred_fallthru
    _
  // Predicated region
  $region18: #{moco_forward.1} parent=0 // pred_check
    _
  $region19: #{moco_forward.1} parent=0 // pred_check_branch
    %23 = sbr.rel (0) target = $region21
  $region20: #{moco_forward.1} parent=0 // pred_region
    _
  $region21: #{moco_forward.1} parent=0 // pred_fallthru
    _
  // Predicated region
  $region22: #{moco_forward.1} parent=0 // pred_check
    _
  $region23: #{moco_forward.1} parent=0 // pred_check_branch
    %25 = sbr.rel (0) target = $region25
  $region24: #{moco_forward.1} parent=0 // pred_region
    _
  $region25: #{moco_forward.1} parent=0 // pred_fallthru
    _
  // Predicated region
  $region26: #{moco_forward.1} parent=0 // pred_check
    _
  $region27: #{moco_forward.1} parent=0 // pred_check_branch
    %27 = sbr.rel (0) target = $region29
  $region28: #{moco_forward.1} parent=0 // pred_region
    _
  $region29: #{moco_forward.1} parent=0 // pred_fallthru
    _
  // Predicated region
  $region30: #{moco_forward.1} parent=0 // pred_check
    _
  $region31: #{moco_forward.1} parent=0 // pred_check_branch
    %29 = sbr.rel (0) target = $region33
  $region32: #{moco_forward.1} parent=0 // pred_region
    _
  $region33: #{moco_forward.1} parent=0 // pred_fallthru
    _
  // Predicated region
  $region34: #{moco_forward.1} parent=0 // pred_check
    _
  $region35: #{moco_forward.1} parent=0 // pred_check_branch
    %31 = sbr.rel (0) target = $region37
  $region36: #{moco_forward.1} parent=0 // pred_region
    _
  $region37: #{moco_forward.1} parent=0 // pred_fallthru
    _
  %v32 = vld [vmem:[%s0] sm:$0xff]
  %v33 = vld [vmem:[%s0 + $0x8] sm:$0xff]
  %v34 = vld [vmem:[%s0 + $0x10] sm:$0xff]
  %v35 = vld [vmem:[%s0 + $0x18] sm:$0xff]
  %v36 = vld [vmem:[%s0 + $0x20] sm:$0xff]
  %v37 = vld [vmem:[%s0 + $0x28] sm:$0xff]
  %v38 = vld [vmem:[%s0 + $0x30] sm:$0xff]
  %v39 = vld [vmem:[%s0 + $0x38] sm:$0xff]
  %v40 = vld [vmem:[%s0 + $0x40] sm:$0xff]
  %v41 = vld [vmem:[%s0 + $0x48] sm:$0xff]
  %v42 = vld [vmem:[%s0 + $0x50] sm:$0xff]
  %v43 = vld [vmem:[%s0 + $0x58] sm:$0xff]
  %v44 = vld [vmem:[%s0 + $0x60] sm:$0xff]
  %v45 = vld [vmem:[%s0 + $0x68] sm:$0xff]
  %v46 = vld [vmem:[%s0 + $0x70] sm:$0xff]
  %v47 = vld [vmem:[%s0 + $0x78] sm:$0xff]
  %v48 = vld [vmem:[%s0 + $0x80] sm:$0xff]
  %v49 = vld [vmem:[%s0 + $0x88] sm:$0xff]
  %v50 = vld [vmem:[%s0 + $0x90] sm:$0xff]
  %v51 = vld [vmem:[%s0 + $0x98] sm:$0xff]
  %v52 = vld [vmem:[%s0 + $0xa0] sm:$0xff]
  %v53 = vld [vmem:[%s0 + $0xa8] sm:$0xff]
  %v54 = vld [vmem:[%s0 + $0xb0] sm:$0xff]
  %v55 = vld [vmem:[%s0 + $0xb8] sm:$0xff]
  %v56 = vld [vmem:[%s0 + $0xc0] sm:$0xff]
  %v57 = vld [vmem:[%s0 + $0xc8] sm:$0xff]
  %v58 = vld [vmem:[%s0 + $0xd0] sm:$0xff]
  %v59 = vld [vmem:[%s0 + $0xd8] sm:$0xff]
  %v60 = vld [vmem:[%s0 + $0xe0] sm:$0xff]
  %v61 = vld [vmem:[%s0 + $0xe8] sm:$0xff]
  %v62 = vld [vmem:[%s0 + $0xf0] sm:$0xff]
  %v63 = vld [vmem:[%s0 + $0xf8] sm:$0xff]
  %v64 = vld [vmem:[%s0 + $0x100] sm:$0xff]
  %v65 = vld [vmem:[%s0 + $0x108] sm:$0xff]
  %v66 = vld [vmem:[%s0 + $0x110] sm:$0xff]
  %v67 = vld [vmem:[%s0 + $0x118] sm:$0xff]
  %v68 = vld [vmem:[%s0 + $0x120] sm:$0xff]
  %v69 = vld [vmem:[%s0 + $0x128] sm:$0xff]
  %v70 = vld [vmem:[%s0 + $0x130] sm:$0xff]
  %v71 = vld [vmem:[%s0 + $0x138] sm:$0xff]
  %v72 = vld [vmem:[%s0 + $0x140] sm:$0xff]
  %v73 = vld [vmem:[%s0 + $0x148] sm:$0xff]
  %v74 = vld [vmem:[%s0 + $0x150] sm:$0xff]
  %v75 = vld [vmem:[%s0 + $0x158] sm:$0xff]
  %v76 = vld [vmem:[%s0 + $0x160] sm:$0xff]
  %v77 = vld [vmem:[%s0 + $0x168] sm:$0xff]
  %v78 = vld [vmem:[%s0 + $0x170] sm:$0xff]
  %v79 = vld [vmem:[%s0 + $0x178] sm:$0xff]
  %v80 = vld [vmem:[%s1] sm:$0xf]
  %v81 = vld [vmem:[%s1 + $0x4] sm:$0xf]
  %v82 = vld [vmem:[%s1 + $0x8] sm:$0xf]
  %v83 = vld [vmem:[%s1 + $0xc] sm:$0xf]
  %v84 = vld [vmem:[%s1 + $0x10] sm:$0xf]
  %v85 = vld [vmem:[%s1 + $0x14] sm:$0xf]
  %v86 = vld [vmem:[%s1 + $0x18] sm:$0xf]
  %v87 = vld [vmem:[%s1 + $0x1c] sm:$0xf]
  %v88 = vld [vmem:[%s1 + $0x20] sm:$0xf]
  %v89 = vld [vmem:[%s1 + $0x24] sm:$0xf]
  %v90 = vld [vmem:[%s1 + $0x28] sm:$0xf]
  %v91 = vld [vmem:[%s1 + $0x2c] sm:$0xf]
  %v92 = vld [vmem:[%s1 + $0x30] sm:$0xf]
  %v93 = vld [vmem:[%s1 + $0x34] sm:$0xf]
  %v94 = vld [vmem:[%s1 + $0x38] sm:$0xf]
  %v95 = vld [vmem:[%s1 + $0x3c] sm:$0xf]
  %v96 = vld [vmem:[%s1 + $0x40] sm:$0xf]
  %v97 = vld [vmem:[%s1 + $0x44] sm:$0xf]
  %v98 = vld [vmem:[%s1 + $0x48] sm:$0xf]
  %v99 = vld [vmem:[%s1 + $0x4c] sm:$0xf]
  %v100 = vld [vmem:[%s1 + $0x50] sm:$0xf]
  %v101 = vld [vmem:[%s1 + $0x54] sm:$0xf]
  %v102 = vld [vmem:[%s1 + $0x58] sm:$0xf]
  %v103 = vld [vmem:[%s1 + $0x5c] sm:$0xf]
  %v104 = vld [vmem:[%s1 + $0x60] sm:$0xf]
  %v105 = vld [vmem:[%s1 + $0x64] sm:$0xf]
  %v106 = vld [vmem:[%s1 + $0x68] sm:$0xf]
  %v107 = vld [vmem:[%s1 + $0x6c] sm:$0xf]
  %v108 = vld [vmem:[%s1 + $0x70] sm:$0xf]
  %v109 = vld [vmem:[%s1 + $0x74] sm:$0xf]
  %v110 = vld [vmem:[%s1 + $0x78] sm:$0xf]
  %v111 = vld [vmem:[%s1 + $0x7c] sm:$0xf]
  %v112 = vld [vmem:[%s1 + $0x80] sm:$0xf]
  %v113 = vld [vmem:[%s1 + $0x84] sm:$0xf]
  %v114 = vld [vmem:[%s1 + $0x88] sm:$0xf]
  %v115 = vld [vmem:[%s1 + $0x8c] sm:$0xf]
  %v116 = vld [vmem:[%s1 + $0x90] sm:$0xf]
  %v117 = vld [vmem:[%s1 + $0x94] sm:$0xf]
  %v118 = vld [vmem:[%s1 + $0x98] sm:$0xf]
  %v119 = vld [vmem:[%s1 + $0x9c] sm:$0xf]
  %v120 = vld [vmem:[%s1 + $0xa0] sm:$0xf]
  %v121 = vld [vmem:[%s1 + $0xa4] sm:$0xf]
  %v122 = vld [vmem:[%s1 + $0xa8] sm:$0xf]
  %v123 = vld [vmem:[%s1 + $0xac] sm:$0xf]
  %v124 = vld [vmem:[%s1 + $0xb0] sm:$0xf]
  %v125 = vld [vmem:[%s1 + $0xb4] sm:$0xf]
  %v126 = vld [vmem:[%s1 + $0xb8] sm:$0xf]
  %v127 = vld [vmem:[%s1 + $0xbc] sm:$0xf]
  %v128 = vld [vmem:[%s1 + $0xc0] sm:$0xf]
  %v129 = vld [vmem:[%s1 + $0xc4] sm:$0xf]
  %v130 = vld [vmem:[%s1 + $0xc8] sm:$0xf]
  %v131 = vld [vmem:[%s1 + $0xcc] sm:$0xf]
  %v132 = vld [vmem:[%s1 + $0xd0] sm:$0xf]
  %v133 = vld [vmem:[%s1 + $0xd4] sm:$0xf]
  %v134 = vld [vmem:[%s1 + $0xd8] sm:$0xf]
  %v135 = vld [vmem:[%s1 + $0xdc] sm:$0xf]
  %v136 = vld [vmem:[%s1 + $0xe0] sm:$0xf]
  %v137 = vld [vmem:[%s1 + $0xe4] sm:$0xf]
  %v138 = vld [vmem:[%s1 + $0xe8] sm:$0xf]
  %v139 = vld [vmem:[%s1 + $0xec] sm:$0xf]
  %v140 = vld [vmem:[%s1 + $0xf0] sm:$0xf]
  %v141 = vld [vmem:[%s1 + $0xf4] sm:$0xf]
  %v142 = vld [vmem:[%s1 + $0xf8] sm:$0xf]
  %v143 = vld [vmem:[%s1 + $0xfc] sm:$0xf]
  %v144 = vld [vmem:[%s1 + $0x100] sm:$0xf]
  %v145 = vld [vmem:[%s1 + $0x104] sm:$0xf]
  %v146 = vld [vmem:[%s1 + $0x108] sm:$0xf]
  %v147 = vld [vmem:[%s1 + $0x10c] sm:$0xf]
  %v148 = vld [vmem:[%s1 + $0x110] sm:$0xf]
  %v149 = vld [vmem:[%s1 + $0x114] sm:$0xf]
  %v150 = vld [vmem:[%s1 + $0x118] sm:$0xf]
  %v151 = vld [vmem:[%s1 + $0x11c] sm:$0xf]
  %v152 = vld [vmem:[%s1 + $0x120] sm:$0xf]
  %v153 = vld [vmem:[%s1 + $0x124] sm:$0xf]
  %v154 = vld [vmem:[%s1 + $0x128] sm:$0xf]
  %v155 = vld [vmem:[%s1 + $0x12c] sm:$0xf]
  %v156 = vld [vmem:[%s1 + $0x130] sm:$0xf]
  %v157 = vld [vmem:[%s1 + $0x134] sm:$0xf]
  %v158 = vld [vmem:[%s1 + $0x138] sm:$0xf]
  %v159 = vld [vmem:[%s1 + $0x13c] sm:$0xf]
  %v160 = vld [vmem:[%s1 + $0x140] sm:$0xf]
  %v161 = vld [vmem:[%s1 + $0x144] sm:$0xf]
  %v162 = vld [vmem:[%s1 + $0x148] sm:$0xf]
  %v163 = vld [vmem:[%s1 + $0x14c] sm:$0xf]
  %v164 = vld [vmem:[%s1 + $0x150] sm:$0xf]
  %v165 = vld [vmem:[%s1 + $0x154] sm:$0xf]
  %v166 = vld [vmem:[%s1 + $0x158] sm:$0xf]
  %v167 = vld [vmem:[%s1 + $0x15c] sm:$0xf]
  %v168 = vld [vmem:[%s1 + $0x160] sm:$0xf]
  %v169 = vld [vmem:[%s1 + $0x164] sm:$0xf]
  %v170 = vld [vmem:[%s1 + $0x168] sm:$0xf]
  %v171 = vld [vmem:[%s1 + $0x16c] sm:$0xf]
  %v172 = vld [vmem:[%s1 + $0x170] sm:$0xf]
  %v173 = vld [vmem:[%s1 + $0x174] sm:$0xf]
  %v174 = vld [vmem:[%s1 + $0x178] sm:$0xf]
  %v175 = vld [vmem:[%s1 + $0x17c] sm:$0xf]
  %v176 = vld [vmem:[%s2] sm:$0xf]
  %v177 = vld [vmem:[%s2 + $0x4] sm:$0xf]
  %v178 = vld [vmem:[%s2 + $0x8] sm:$0xf]
  %v179 = vld [vmem:[%s2 + $0xc] sm:$0xf]
  %v180 = vld [vmem:[%s2 + $0x10] sm:$0xf]
  %v181 = vld [vmem:[%s2 + $0x14] sm:$0xf]
  %v182 = vld [vmem:[%s2 + $0x18] sm:$0xf]
  %v183 = vld [vmem:[%s2 + $0x1c] sm:$0xf]
  %v184 = vld [vmem:[%s2 + $0x20] sm:$0xf]
  %v185 = vld [vmem:[%s2 + $0x24] sm:$0xf]
  %v186 = vld [vmem:[%s2 + $0x28] sm:$0xf]
  %v187 = vld [vmem:[%s2 + $0x2c] sm:$0xf]
  %v188 = vld [vmem:[%s2 + $0x30] sm:$0xf]
  %v189 = vld [vmem:[%s2 + $0x34] sm:$0xf]
  %v190 = vld [vmem:[%s2 + $0x38] sm:$0xf]
  %v191 = vld [vmem:[%s2 + $0x3c] sm:$0xf]
  %v192 = vunpack.c.l.bf16 %v176
  %v193 = vunpack.c.l.bf16 %v177
  %v194 = vunpack.c.l.bf16 %v178
  %v195 = vunpack.c.l.bf16 %v179
  %v196 = vunpack.c.l.bf16 %v180
  %v197 = vunpack.c.l.bf16 %v181
  %v198 = vunpack.c.l.bf16 %v182
  %v199 = vunpack.c.l.bf16 %v183
  %v200 = vunpack.c.l.bf16 %v184
  %v201 = vunpack.c.l.bf16 %v185
  %v202 = vunpack.c.l.bf16 %v186
  %v203 = vunpack.c.l.bf16 %v187
  %v204 = vunpack.c.l.bf16 %v188
  %v205 = vunpack.c.l.bf16 %v189
  %v206 = vunpack.c.l.bf16 %v190
  %v207 = vunpack.c.l.bf16 %v191
  %v256 = vunpack.c.l.b16 %v32
  %v257 = vunpack.c.h.b16 %v32
  %v258 = vunpack.c.l.b16 %v33
  %v259 = vunpack.c.h.b16 %v33
  %v260 = vunpack.c.l.b16 %v34
  %v261 = vunpack.c.h.b16 %v34
  %v262 = vunpack.c.l.b16 %v35
  %v263 = vunpack.c.h.b16 %v35
  %v264 = vunpack.c.l.b16 %v36
  %v265 = vunpack.c.h.b16 %v36
  %v266 = vunpack.c.l.b16 %v37
  %v267 = vunpack.c.h.b16 %v37
  %v268 = vunpack.c.l.b16 %v38
  %v269 = vunpack.c.h.b16 %v38
  %v270 = vunpack.c.l.b16 %v39
  %v271 = vunpack.c.h.b16 %v39
  %v272 = vunpack.c.l.b16 %v40
  %v273 = vunpack.c.h.b16 %v40
  %v274 = vunpack.c.l.b16 %v41
  %v275 = vunpack.c.h.b16 %v41
  %v276 = vunpack.c.l.b16 %v42
  %v277 = vunpack.c.h.b16 %v42
  %v278 = vunpack.c.l.b16 %v43
  %v279 = vunpack.c.h.b16 %v43
  %v280 = vunpack.c.l.b16 %v44
  %v281 = vunpack.c.h.b16 %v44
  %v282 = vunpack.c.l.b16 %v45
  %v283 = vunpack.c.h.b16 %v45
  %v284 = vunpack.c.l.b16 %v46
  %v285 = vunpack.c.h.b16 %v46
  %v286 = vunpack.c.l.b16 %v47
  %v287 = vunpack.c.h.b16 %v47
  %v288 = vunpack.c.l.b16 %v48
  %v289 = vunpack.c.h.b16 %v48
  %v290 = vunpack.c.l.b16 %v49
  %v291 = vunpack.c.h.b16 %v49
  %v292 = vunpack.c.l.b16 %v50
  %v293 = vunpack.c.h.b16 %v50
  %v294 = vunpack.c.l.b16 %v51
  %v295 = vunpack.c.h.b16 %v51
  %v296 = vunpack.c.l.b16 %v52
  %v297 = vunpack.c.h.b16 %v52
  %v298 = vunpack.c.l.b16 %v53
  %v299 = vunpack.c.h.b16 %v53
  %v300 = vunpack.c.l.b16 %v54
  %v301 = vunpack.c.h.b16 %v54
  %v302 = vunpack.c.l.b16 %v55
  %v303 = vunpack.c.h.b16 %v55
  %v304 = vunpack.c.l.b16 %v56
  %v305 = vunpack.c.h.b16 %v56
  %v306 = vunpack.c.l.b16 %v57
  %v307 = vunpack.c.h.b16 %v57
  %v308 = vunpack.c.l.b16 %v58
  %v309 = vunpack.c.h.b16 %v58
  %v310 = vunpack.c.l.b16 %v59
  %v311 = vunpack.c.h.b16 %v59
  %v312 = vunpack.c.l.b16 %v60
  %v313 = vunpack.c.h.b16 %v60
  %v314 = vunpack.c.l.b16 %v61
  %v315 = vunpack.c.h.b16 %v61
  %v316 = vunpack.c.l.b16 %v62
  %v317 = vunpack.c.h.b16 %v62
  %v318 = vunpack.c.l.b16 %v63
  %v319 = vunpack.c.h.b16 %v63
  %v320 = vunpack.c.l.b16 %v64
  %v321 = vunpack.c.h.b16 %v64
  %v322 = vunpack.c.l.b16 %v65
  %v323 = vunpack.c.h.b16 %v65
  %v324 = vunpack.c.l.b16 %v66
  %v325 = vunpack.c.h.b16 %v66
  %v326 = vunpack.c.l.b16 %v67
  %v327 = vunpack.c.h.b16 %v67
  %v328 = vunpack.c.l.b16 %v68
  %v329 = vunpack.c.h.b16 %v68
  %v330 = vunpack.c.l.b16 %v69
  %v331 = vunpack.c.h.b16 %v69
  %v332 = vunpack.c.l.b16 %v70
  %v333 = vunpack.c.h.b16 %v70
  %v334 = vunpack.c.l.b16 %v71
  %v335 = vunpack.c.h.b16 %v71
  %v336 = vunpack.c.l.b16 %v72
  %v337 = vunpack.c.h.b16 %v72
  %v338 = vunpack.c.l.b16 %v73
  %v339 = vunpack.c.h.b16 %v73
  %v340 = vunpack.c.l.b16 %v74
  %v341 = vunpack.c.h.b16 %v74
  %v342 = vunpack.c.l.b16 %v75
  %v343 = vunpack.c.h.b16 %v75
  %v344 = vunpack.c.l.b16 %v76
  %v345 = vunpack.c.h.b16 %v76
  %v346 = vunpack.c.l.b16 %v77
  %v347 = vunpack.c.h.b16 %v77
  %v348 = vunpack.c.l.b16 %v78
  %v349 = vunpack.c.h.b16 %v78
  %v350 = vunpack.c.l.b16 %v79
  %v351 = vunpack.c.h.b16 %v79
  %v352 = vpack.c.b16 %v262, %v256
  %v353 = vpack.c.b16 %v263, %v257
  %v354 = vpack.c.b16 %v264, %v258
  %v355 = vpack.c.b16 %v265, %v259
  %v356 = vpack.c.b16 %v266, %v260
  %v357 = vpack.c.b16 %v267, %v261
  %v358 = vpack.c.b16 %v274, %v268
  %v359 = vpack.c.b16 %v275, %v269
  %v360 = vpack.c.b16 %v276, %v270
  %v361 = vpack.c.b16 %v277, %v271
  %v362 = vpack.c.b16 %v278, %v272
  %v363 = vpack.c.b16 %v279, %v273
  %v364 = vpack.c.b16 %v286, %v280
  %v365 = vpack.c.b16 %v287, %v281
  %v366 = vpack.c.b16 %v288, %v282
  %v367 = vpack.c.b16 %v289, %v283
  %v368 = vpack.c.b16 %v290, %v284
  %v369 = vpack.c.b16 %v291, %v285
  %v370 = vpack.c.b16 %v298, %v292
  %v371 = vpack.c.b16 %v299, %v293
  %v372 = vpack.c.b16 %v300, %v294
  %v373 = vpack.c.b16 %v301, %v295
  %v374 = vpack.c.b16 %v302, %v296
  %v375 = vpack.c.b16 %v303, %v297
  %v376 = vpack.c.b16 %v310, %v304
  %v377 = vpack.c.b16 %v311, %v305
  %v378 = vpack.c.b16 %v312, %v306
  %v379 = vpack.c.b16 %v313, %v307
  %v380 = vpack.c.b16 %v314, %v308
  %v381 = vpack.c.b16 %v315, %v309
  %v382 = vpack.c.b16 %v322, %v316
  %v383 = vpack.c.b16 %v323, %v317
  %v384 = vpack.c.b16 %v324, %v318
  %v385 = vpack.c.b16 %v325, %v319
  %v386 = vpack.c.b16 %v326, %v320
  %v387 = vpack.c.b16 %v327, %v321
  %v388 = vpack.c.b16 %v334, %v328
  %v389 = vpack.c.b16 %v335, %v329
  %v390 = vpack.c.b16 %v336, %v330
  %v391 = vpack.c.b16 %v337, %v331
  %v392 = vpack.c.b16 %v338, %v332
  %v393 = vpack.c.b16 %v339, %v333
  %v394 = vpack.c.b16 %v346, %v340
  %v395 = vpack.c.b16 %v347, %v341
  %v396 = vpack.c.b16 %v348, %v342
  %v397 = vpack.c.b16 %v349, %v343
  %v398 = vpack.c.b16 %v350, %v344
  %v399 = vpack.c.b16 %v351, %v345
  %v544 = vunpack.c.l.b16 %v80
  %v545 = vunpack.c.l.b16 %v81
  %v546 = vunpack.c.l.b16 %v82
  %v547 = vunpack.c.l.b16 %v83
  %v548 = vunpack.c.l.b16 %v84
  %v549 = vunpack.c.l.b16 %v85
  %v550 = vunpack.c.l.b16 %v86
  %v551 = vunpack.c.l.b16 %v87
  %v552 = vunpack.c.l.b16 %v88
  %v553 = vunpack.c.l.b16 %v89
  %v554 = vunpack.c.l.b16 %v90
  %v555 = vunpack.c.l.b16 %v91
  %v556 = vunpack.c.l.b16 %v92
  %v557 = vunpack.c.l.b16 %v93
  %v558 = vunpack.c.l.b16 %v94
  %v559 = vunpack.c.l.b16 %v95
  %v560 = vunpack.c.l.b16 %v96
  %v561 = vunpack.c.l.b16 %v97
  %v562 = vunpack.c.l.b16 %v98
  %v563 = vunpack.c.l.b16 %v99
  %v564 = vunpack.c.l.b16 %v100
  %v565 = vunpack.c.l.b16 %v101
  %v566 = vunpack.c.l.b16 %v102
  %v567 = vunpack.c.l.b16 %v103
  %v568 = vunpack.c.l.b16 %v104
  %v569 = vunpack.c.l.b16 %v105
  %v570 = vunpack.c.l.b16 %v106
  %v571 = vunpack.c.l.b16 %v107
  %v572 = vunpack.c.l.b16 %v108
  %v573 = vunpack.c.l.b16 %v109
  %v574 = vunpack.c.l.b16 %v110
  %v575 = vunpack.c.l.b16 %v111
  %v576 = vunpack.c.l.b16 %v112
  %v577 = vunpack.c.l.b16 %v113
  %v578 = vunpack.c.l.b16 %v114
  %v579 = vunpack.c.l.b16 %v115
  %v580 = vunpack.c.l.b16 %v116
  %v581 = vunpack.c.l.b16 %v117
  %v582 = vunpack.c.l.b16 %v118
  %v583 = vunpack.c.l.b16 %v119
  %v584 = vunpack.c.l.b16 %v120
  %v585 = vunpack.c.l.b16 %v121
  %v586 = vunpack.c.l.b16 %v122
  %v587 = vunpack.c.l.b16 %v123
  %v588 = vunpack.c.l.b16 %v124
  %v589 = vunpack.c.l.b16 %v125
  %v590 = vunpack.c.l.b16 %v126
  %v591 = vunpack.c.l.b16 %v127
  %v592 = vunpack.c.l.b16 %v128
  %v593 = vunpack.c.l.b16 %v129
  %v594 = vunpack.c.l.b16 %v130
  %v595 = vunpack.c.l.b16 %v131
  %v596 = vunpack.c.l.b16 %v132
  %v597 = vunpack.c.l.b16 %v133
  %v598 = vunpack.c.l.b16 %v134
  %v599 = vunpack.c.l.b16 %v135
  %v600 = vunpack.c.l.b16 %v136
  %v601 = vunpack.c.l.b16 %v137
  %v602 = vunpack.c.l.b16 %v138
  %v603 = vunpack.c.l.b16 %v139
  %v604 = vunpack.c.l.b16 %v140
  %v605 = vunpack.c.l.b16 %v141
  %v606 = vunpack.c.l.b16 %v142
  %v607 = vunpack.c.l.b16 %v143
  %v608 = vunpack.c.l.b16 %v144
  %v609 = vunpack.c.l.b16 %v145
  %v610 = vunpack.c.l.b16 %v146
  %v611 = vunpack.c.l.b16 %v147
  %v612 = vunpack.c.l.b16 %v148
  %v613 = vunpack.c.l.b16 %v149
  %v614 = vunpack.c.l.b16 %v150
  %v615 = vunpack.c.l.b16 %v151
  %v616 = vunpack.c.l.b16 %v152
  %v617 = vunpack.c.l.b16 %v153
  %v618 = vunpack.c.l.b16 %v154
  %v619 = vunpack.c.l.b16 %v155
  %v620 = vunpack.c.l.b16 %v156
  %v621 = vunpack.c.l.b16 %v157
  %v622 = vunpack.c.l.b16 %v158
  %v623 = vunpack.c.l.b16 %v159
  %v624 = vunpack.c.l.b16 %v160
  %v625 = vunpack.c.l.b16 %v161
  %v626 = vunpack.c.l.b16 %v162
  %v627 = vunpack.c.l.b16 %v163
  %v628 = vunpack.c.l.b16 %v164
  %v629 = vunpack.c.l.b16 %v165
  %v630 = vunpack.c.l.b16 %v166
  %v631 = vunpack.c.l.b16 %v167
  %v632 = vunpack.c.l.b16 %v168
  %v633 = vunpack.c.l.b16 %v169
  %v634 = vunpack.c.l.b16 %v170
  %v635 = vunpack.c.l.b16 %v171
  %v636 = vunpack.c.l.b16 %v172
  %v637 = vunpack.c.l.b16 %v173
  %v638 = vunpack.c.l.b16 %v174
  %v639 = vunpack.c.l.b16 %v175
  %v640 = vpack.c.b16 %v545, %v544
  %v641 = vpack.c.b16 %v547, %v546
  %v642 = vpack.c.b16 %v549, %v548
  %v643 = vpack.c.b16 %v551, %v550
  %v644 = vpack.c.b16 %v553, %v552
  %v645 = vpack.c.b16 %v555, %v554
  %v646 = vpack.c.b16 %v557, %v556
  %v647 = vpack.c.b16 %v559, %v558
  %v648 = vpack.c.b16 %v561, %v560
  %v649 = vpack.c.b16 %v563, %v562
  %v650 = vpack.c.b16 %v565, %v564
  %v651 = vpack.c.b16 %v567, %v566
  %v652 = vpack.c.b16 %v569, %v568
  %v653 = vpack.c.b16 %v571, %v570
  %v654 = vpack.c.b16 %v573, %v572
  %v655 = vpack.c.b16 %v575, %v574
  %v656 = vpack.c.b16 %v577, %v576
  %v657 = vpack.c.b16 %v579, %v578
  %v658 = vpack.c.b16 %v581, %v580
  %v659 = vpack.c.b16 %v583, %v582
  %v660 = vpack.c.b16 %v585, %v584
  %v661 = vpack.c.b16 %v587, %v586
  %v662 = vpack.c.b16 %v589, %v588
  %v663 = vpack.c.b16 %v591, %v590
  %v664 = vpack.c.b16 %v593, %v592
  %v665 = vpack.c.b16 %v595, %v594
  %v666 = vpack.c.b16 %v597, %v596
  %v667 = vpack.c.b16 %v599, %v598
  %v668 = vpack.c.b16 %v601, %v600
  %v669 = vpack.c.b16 %v603, %v602
  %v670 = vpack.c.b16 %v605, %v604
  %v671 = vpack.c.b16 %v607, %v606
  %v672 = vpack.c.b16 %v609, %v608
  %v673 = vpack.c.b16 %v611, %v610
  %v674 = vpack.c.b16 %v613, %v612
  %v675 = vpack.c.b16 %v615, %v614
  %v676 = vpack.c.b16 %v617, %v616
  %v677 = vpack.c.b16 %v619, %v618
  %v678 = vpack.c.b16 %v621, %v620
  %v679 = vpack.c.b16 %v623, %v622
  %v680 = vpack.c.b16 %v625, %v624
  %v681 = vpack.c.b16 %v627, %v626
  %v682 = vpack.c.b16 %v629, %v628
  %v683 = vpack.c.b16 %v631, %v630
  %v684 = vpack.c.b16 %v633, %v632
  %v685 = vpack.c.b16 %v635, %v634
  %v686 = vpack.c.b16 %v637, %v636
  %v687 = vpack.c.b16 %v639, %v638
  %736 = vmatpush.bf16.msra.mxu0 %v647
  %737 = vmatpush.bf16.msra.mxu0 %v646
  %738 = vmatpush.bf16.msra.mxu0 %v645
  %739 = vmatpush.bf16.msra.mxu0 %v644
  %740 = vmatpush.bf16.msra.mxu0 %v643
  %741 = vmatpush.bf16.msra.mxu0 %v642
  %742 = vmatpush.bf16.msra.mxu0 %v641
  %743 = vmatpush.bf16.msra.mxu0 %v640
  %744 = vmatmul.bf16.gmra.mxu0 %v352
  %v745 = vpop.f32.mrf.mxu0
  %v746 = vadd.f32 %v192, %v745
  %v747 = vpop.f32.mrf.mxu0
  %v748 = vadd.f32 %v193, %v747
  %749 = vmatmul.bf16.gmra.mxu0 %v358
  %v750 = vpop.f32.mrf.mxu0
  %v751 = vadd.f32 %v194, %v750
  %v752 = vpop.f32.mrf.mxu0
  %v753 = vadd.f32 %v195, %v752
  %754 = vmatmul.bf16.gmra.mxu0 %v364
  %v755 = vpop.f32.mrf.mxu0
  %v756 = vadd.f32 %v196, %v755
  %v757 = vpop.f32.mrf.mxu0
  %v758 = vadd.f32 %v197, %v757
  %759 = vmatmul.bf16.gmra.mxu0 %v370
  %v760 = vpop.f32.mrf.mxu0
  %v761 = vadd.f32 %v198, %v760
  %v762 = vpop.f32.mrf.mxu0
  %v763 = vadd.f32 %v199, %v762
  %764 = vmatmul.bf16.gmra.mxu0 %v376
  %v765 = vpop.f32.mrf.mxu0
  %v766 = vadd.f32 %v200, %v765
  %v767 = vpop.f32.mrf.mxu0
  %v768 = vadd.f32 %v201, %v767
  %769 = vmatmul.bf16.gmra.mxu0 %v382
  %v770 = vpop.f32.mrf.mxu0
  %v771 = vadd.f32 %v202, %v770
  %v772 = vpop.f32.mrf.mxu0
  %v773 = vadd.f32 %v203, %v772
  %774 = vmatmul.bf16.gmra.mxu0 %v388
  %v775 = vpop.f32.mrf.mxu0
  %v776 = vadd.f32 %v204, %v775
  %v777 = vpop.f32.mrf.mxu0
  %v778 = vadd.f32 %v205, %v777
  %779 = vmatmul.bf16.gmra.mxu0 %v394
  %v780 = vpop.f32.mrf.mxu0
  %v781 = vadd.f32 %v206, %v780
  %v782 = vpop.f32.mrf.mxu0
  %v783 = vadd.f32 %v207, %v782
  %784 = vdwg.mxu0
  %785 = vmatpush.bf16.msra.mxu0 %v655
  %786 = vmatpush.bf16.msra.mxu0 %v654
  %787 = vmatpush.bf16.msra.mxu0 %v653
  %788 = vmatpush.bf16.msra.mxu0 %v652
  %789 = vmatpush.bf16.msra.mxu0 %v651
  %790 = vmatpush.bf16.msra.mxu0 %v650
  %791 = vmatpush.bf16.msra.mxu0 %v649
  %792 = vmatpush.bf16.msra.mxu0 %v648
  %793 = vmatmul.bf16.gmra.mxu0 %v353
  %v794 = vpop.f32.mrf.mxu0
  %v795 = vadd.f32 %v746, %v794
  %v796 = vpop.f32.mrf.mxu0
  %v797 = vadd.f32 %v748, %v796
  %798 = vmatmul.bf16.gmra.mxu0 %v359
  %v799 = vpop.f32.mrf.mxu0
  %v800 = vadd.f32 %v751, %v799
  %v801 = vpop.f32.mrf.mxu0
  %v802 = vadd.f32 %v753, %v801
  %803 = vmatmul.bf16.gmra.mxu0 %v365
  %v804 = vpop.f32.mrf.mxu0
  %v805 = vadd.f32 %v756, %v804
  %v806 = vpop.f32.mrf.mxu0
  %v807 = vadd.f32 %v758, %v806
  %808 = vmatmul.bf16.gmra.mxu0 %v371
  %v809 = vpop.f32.mrf.mxu0
  %v810 = vadd.f32 %v761, %v809
  %v811 = vpop.f32.mrf.mxu0
  %v812 = vadd.f32 %v763, %v811
  %813 = vmatmul.bf16.gmra.mxu0 %v377
  %v814 = vpop.f32.mrf.mxu0
  %v815 = vadd.f32 %v766, %v814
  %v816 = vpop.f32.mrf.mxu0
  %v817 = vadd.f32 %v768, %v816
  %818 = vmatmul.bf16.gmra.mxu0 %v383
  %v819 = vpop.f32.mrf.mxu0
  %v820 = vadd.f32 %v771, %v819
  %v821 = vpop.f32.mrf.mxu0
  %v822 = vadd.f32 %v773, %v821
  %823 = vmatmul.bf16.gmra.mxu0 %v389
  %v824 = vpop.f32.mrf.mxu0
  %v825 = vadd.f32 %v776, %v824
  %v826 = vpop.f32.mrf.mxu0
  %v827 = vadd.f32 %v778, %v826
  %828 = vmatmul.bf16.gmra.mxu0 %v395
  %v829 = vpop.f32.mrf.mxu0
  %v830 = vadd.f32 %v781, %v829
  %v831 = vpop.f32.mrf.mxu0
  %v832 = vadd.f32 %v783, %v831
  %833 = vdwg.mxu0
  %834 = vmatpush.bf16.msra.mxu0 %v663
  %835 = vmatpush.bf16.msra.mxu0 %v662
  %836 = vmatpush.bf16.msra.mxu0 %v661
  %837 = vmatpush.bf16.msra.mxu0 %v660
  %838 = vmatpush.bf16.msra.mxu0 %v659
  %839 = vmatpush.bf16.msra.mxu0 %v658
  %840 = vmatpush.bf16.msra.mxu0 %v657
  %841 = vmatpush.bf16.msra.mxu0 %v656
  %842 = vmatmul.bf16.gmra.mxu0 %v354
  %v843 = vpop.f32.mrf.mxu0
  %v844 = vadd.f32 %v795, %v843
  %v845 = vpop.f32.mrf.mxu0
  %v846 = vadd.f32 %v797, %v845
  %847 = vmatmul.bf16.gmra.mxu0 %v360
  %v848 = vpop.f32.mrf.mxu0
  %v849 = vadd.f32 %v800, %v848
  %v850 = vpop.f32.mrf.mxu0
  %v851 = vadd.f32 %v802, %v850
  %852 = vmatmul.bf16.gmra.mxu0 %v366
  %v853 = vpop.f32.mrf.mxu0
  %v854 = vadd.f32 %v805, %v853
  %v855 = vpop.f32.mrf.mxu0
  %v856 = vadd.f32 %v807, %v855
  %857 = vmatmul.bf16.gmra.mxu0 %v372
  %v858 = vpop.f32.mrf.mxu0
  %v859 = vadd.f32 %v810, %v858
  %v860 = vpop.f32.mrf.mxu0
  %v861 = vadd.f32 %v812, %v860
  %862 = vmatmul.bf16.gmra.mxu0 %v378
  %v863 = vpop.f32.mrf.mxu0
  %v864 = vadd.f32 %v815, %v863
  %v865 = vpop.f32.mrf.mxu0
  %v866 = vadd.f32 %v817, %v865
  %867 = vmatmul.bf16.gmra.mxu0 %v384
  %v868 = vpop.f32.mrf.mxu0
  %v869 = vadd.f32 %v820, %v868
  %v870 = vpop.f32.mrf.mxu0
  %v871 = vadd.f32 %v822, %v870
  %872 = vmatmul.bf16.gmra.mxu0 %v390
  %v873 = vpop.f32.mrf.mxu0
  %v874 = vadd.f32 %v825, %v873
  %v875 = vpop.f32.mrf.mxu0
  %v876 = vadd.f32 %v827, %v875
  %877 = vmatmul.bf16.gmra.mxu0 %v396
  %v878 = vpop.f32.mrf.mxu0
  %v879 = vadd.f32 %v830, %v878
  %v880 = vpop.f32.mrf.mxu0
  %v881 = vadd.f32 %v832, %v880
  %882 = vdwg.mxu0
  %883 = vmatpush.bf16.msra.mxu0 %v671
  %884 = vmatpush.bf16.msra.mxu0 %v670
  %885 = vmatpush.bf16.msra.mxu0 %v669
  %886 = vmatpush.bf16.msra.mxu0 %v668
  %887 = vmatpush.bf16.msra.mxu0 %v667
  %888 = vmatpush.bf16.msra.mxu0 %v666
  %889 = vmatpush.bf16.msra.mxu0 %v665
  %890 = vmatpush.bf16.msra.mxu0 %v664
  %891 = vmatmul.bf16.gmra.mxu0 %v355
  %v892 = vpop.f32.mrf.mxu0
  %v893 = vadd.f32 %v844, %v892
  %v894 = vpop.f32.mrf.mxu0
  %v895 = vadd.f32 %v846, %v894
  %896 = vmatmul.bf16.gmra.mxu0 %v361
  %v897 = vpop.f32.mrf.mxu0
  %v898 = vadd.f32 %v849, %v897
  %v899 = vpop.f32.mrf.mxu0
  %v900 = vadd.f32 %v851, %v899
  %901 = vmatmul.bf16.gmra.mxu0 %v367
  %v902 = vpop.f32.mrf.mxu0
  %v903 = vadd.f32 %v854, %v902
  %v904 = vpop.f32.mrf.mxu0
  %v905 = vadd.f32 %v856, %v904
  %906 = vmatmul.bf16.gmra.mxu0 %v373
  %v907 = vpop.f32.mrf.mxu0
  %v908 = vadd.f32 %v859, %v907
  %v909 = vpop.f32.mrf.mxu0
  %v910 = vadd.f32 %v861, %v909
  %911 = vmatmul.bf16.gmra.mxu0 %v379
  %v912 = vpop.f32.mrf.mxu0
  %v913 = vadd.f32 %v864, %v912
  %v914 = vpop.f32.mrf.mxu0
  %v915 = vadd.f32 %v866, %v914
  %916 = vmatmul.bf16.gmra.mxu0 %v385
  %v917 = vpop.f32.mrf.mxu0
  %v918 = vadd.f32 %v869, %v917
  %v919 = vpop.f32.mrf.mxu0
  %v920 = vadd.f32 %v871, %v919
  %921 = vmatmul.bf16.gmra.mxu0 %v391
  %v922 = vpop.f32.mrf.mxu0
  %v923 = vadd.f32 %v874, %v922
  %v924 = vpop.f32.mrf.mxu0
  %v925 = vadd.f32 %v876, %v924
  %926 = vmatmul.bf16.gmra.mxu0 %v397
  %v927 = vpop.f32.mrf.mxu0
  %v928 = vadd.f32 %v879, %v927
  %v929 = vpop.f32.mrf.mxu0
  %v930 = vadd.f32 %v881, %v929
  %931 = vdwg.mxu0
  %932 = vmatpush.bf16.msra.mxu0 %v679
  %933 = vmatpush.bf16.msra.mxu0 %v678
  %934 = vmatpush.bf16.msra.mxu0 %v677
  %935 = vmatpush.bf16.msra.mxu0 %v676
  %936 = vmatpush.bf16.msra.mxu0 %v675
  %937 = vmatpush.bf16.msra.mxu0 %v674
  %938 = vmatpush.bf16.msra.mxu0 %v673
  %939 = vmatpush.bf16.msra.mxu0 %v672
  %940 = vmatmul.bf16.gmra.mxu0 %v356
  %v941 = vpop.f32.mrf.mxu0
  %v942 = vadd.f32 %v893, %v941
  %v943 = vpop.f32.mrf.mxu0
  %v944 = vadd.f32 %v895, %v943
  %945 = vmatmul.bf16.gmra.mxu0 %v362
  %v946 = vpop.f32.mrf.mxu0
  %v947 = vadd.f32 %v898, %v946
  %v948 = vpop.f32.mrf.mxu0
  %v949 = vadd.f32 %v900, %v948
  %950 = vmatmul.bf16.gmra.mxu0 %v368
  %v951 = vpop.f32.mrf.mxu0
  %v952 = vadd.f32 %v903, %v951
  %v953 = vpop.f32.mrf.mxu0
  %v954 = vadd.f32 %v905, %v953
  %955 = vmatmul.bf16.gmra.mxu0 %v374
  %v956 = vpop.f32.mrf.mxu0
  %v957 = vadd.f32 %v908, %v956
  %v958 = vpop.f32.mrf.mxu0
  %v959 = vadd.f32 %v910, %v958
  %960 = vmatmul.bf16.gmra.mxu0 %v380
  %v961 = vpop.f32.mrf.mxu0
  %v962 = vadd.f32 %v913, %v961
  %v963 = vpop.f32.mrf.mxu0
  %v964 = vadd.f32 %v915, %v963
  %965 = vmatmul.bf16.gmra.mxu0 %v386
  %v966 = vpop.f32.mrf.mxu0
  %v967 = vadd.f32 %v918, %v966
  %v968 = vpop.f32.mrf.mxu0
  %v969 = vadd.f32 %v920, %v968
  %970 = vmatmul.bf16.gmra.mxu0 %v392
  %v971 = vpop.f32.mrf.mxu0
  %v972 = vadd.f32 %v923, %v971
  %v973 = vpop.f32.mrf.mxu0
  %v974 = vadd.f32 %v925, %v973
  %975 = vmatmul.bf16.gmra.mxu0 %v398
  %v976 = vpop.f32.mrf.mxu0
  %v977 = vadd.f32 %v928, %v976
  %v978 = vpop.f32.mrf.mxu0
  %v979 = vadd.f32 %v930, %v978
  %980 = vdwg.mxu0
  %981 = vmatpush.bf16.msra.mxu0 %v687
  %982 = vmatpush.bf16.msra.mxu0 %v686
  %983 = vmatpush.bf16.msra.mxu0 %v685
  %984 = vmatpush.bf16.msra.mxu0 %v684
  %985 = vmatpush.bf16.msra.mxu0 %v683
  %986 = vmatpush.bf16.msra.mxu0 %v682
  %987 = vmatpush.bf16.msra.mxu0 %v681
  %988 = vmatpush.bf16.msra.mxu0 %v680
  %989 = vmatmul.bf16.gmra.mxu0 %v357
  %v990 = vpop.f32.mrf.mxu0
  %v991 = vadd.f32 %v942, %v990
  %v992 = vpop.f32.mrf.mxu0
  %v993 = vadd.f32 %v944, %v992
  %994 = vmatmul.bf16.gmra.mxu0 %v363
  %v995 = vpop.f32.mrf.mxu0
  %v996 = vadd.f32 %v947, %v995
  %v997 = vpop.f32.mrf.mxu0
  %v998 = vadd.f32 %v949, %v997
  %999 = vmatmul.bf16.gmra.mxu0 %v369
  %v1000 = vpop.f32.mrf.mxu0
  %v1001 = vadd.f32 %v952, %v1000
  %v1002 = vpop.f32.mrf.mxu0
  %v1003 = vadd.f32 %v954, %v1002
  %1004 = vmatmul.bf16.gmra.mxu0 %v375
  %v1005 = vpop.f32.mrf.mxu0
  %v1006 = vadd.f32 %v957, %v1005
  %v1007 = vpop.f32.mrf.mxu0
  %v1008 = vadd.f32 %v959, %v1007
  %1009 = vmatmul.bf16.gmra.mxu0 %v381
  %v1010 = vpop.f32.mrf.mxu0
  %v1011 = vadd.f32 %v962, %v1010
  %v1012 = vpop.f32.mrf.mxu0
  %v1013 = vadd.f32 %v964, %v1012
  %1014 = vmatmul.bf16.gmra.mxu0 %v387
  %v1015 = vpop.f32.mrf.mxu0
  %v1016 = vadd.f32 %v967, %v1015
  %v1017 = vpop.f32.mrf.mxu0
  %v1018 = vadd.f32 %v969, %v1017
  %1019 = vmatmul.bf16.gmra.mxu0 %v393
  %v1020 = vpop.f32.mrf.mxu0
  %v1021 = vadd.f32 %v972, %v1020
  %v1022 = vpop.f32.mrf.mxu0
  %v1023 = vadd.f32 %v974, %v1022
  %1024 = vmatmul.bf16.gmra.mxu0 %v399
  %v1025 = vpop.f32.mrf.mxu0
  %v1026 = vadd.f32 %v977, %v1025
  %v1027 = vpop.f32.mrf.mxu0
  %v1028 = vadd.f32 %v979, %v1027
  %1029 = vdwg.mxu0
  %v1030 = vmax.f32 %v991, 0.0
  %v1031 = vmax.f32 %v993, 0.0
  %v1032 = vmax.f32 %v996, 0.0
  %v1033 = vmax.f32 %v998, 0.0
  %v1034 = vmax.f32 %v1001, 0.0
  %v1035 = vmax.f32 %v1003, 0.0
  %v1036 = vmax.f32 %v1006, 0.0
  %v1037 = vmax.f32 %v1008, 0.0
  %v1038 = vmax.f32 %v1011, 0.0
  %v1039 = vmax.f32 %v1013, 0.0
  %v1040 = vmax.f32 %v1016, 0.0
  %v1041 = vmax.f32 %v1018, 0.0
  %v1042 = vmax.f32 %v1021, 0.0
  %v1043 = vmax.f32 %v1023, 0.0
  %v1044 = vmax.f32 %v1026, 0.0
  %v1045 = vmax.f32 %v1028, 0.0
  %v1046 = vadd.f32 %v1030, %v1031
  %v1047 = vrot.slane %v1046, 4
  %v1048 = vadd.f32 %v1046, %v1047
  %v1049 = vrot.slane %v1048, 2
  %v1050 = vadd.f32 %v1048, %v1049
  %v1051 = vrot.slane %v1050, 1
  %v1052 = vadd.f32 %v1050, %v1051
  %v1053 = vadd.f32 %v1032, %v1033
  %v1054 = vrot.slane %v1053, 4
  %v1055 = vadd.f32 %v1053, %v1054
  %v1056 = vrot.slane %v1055, 2
  %v1057 = vadd.f32 %v1055, %v1056
  %v1058 = vrot.slane %v1057, 1
  %v1059 = vadd.f32 %v1057, %v1058
  %v1060 = vadd.f32 %v1034, %v1035
  %v1061 = vrot.slane %v1060, 4
  %v1062 = vadd.f32 %v1060, %v1061
  %v1063 = vrot.slane %v1062, 2
  %v1064 = vadd.f32 %v1062, %v1063
  %v1065 = vrot.slane %v1064, 1
  %v1066 = vadd.f32 %v1064, %v1065
  %v1067 = vadd.f32 %v1036, %v1037
  %v1068 = vrot.slane %v1067, 4
  %v1069 = vadd.f32 %v1067, %v1068
  %v1070 = vrot.slane %v1069, 2
  %v1071 = vadd.f32 %v1069, %v1070
  %v1072 = vrot.slane %v1071, 1
  %v1073 = vadd.f32 %v1071, %v1072
  %v1074 = vadd.f32 %v1038, %v1039
  %v1075 = vrot.slane %v1074, 4
  %v1076 = vadd.f32 %v1074, %v1075
  %v1077 = vrot.slane %v1076, 2
  %v1078 = vadd.f32 %v1076, %v1077
  %v1079 = vrot.slane %v1078, 1
  %v1080 = vadd.f32 %v1078, %v1079
  %v1081 = vadd.f32 %v1040, %v1041
  %v1082 = vrot.slane %v1081, 4
  %v1083 = vadd.f32 %v1081, %v1082
  %v1084 = vrot.slane %v1083, 2
  %v1085 = vadd.f32 %v1083, %v1084
  %v1086 = vrot.slane %v1085, 1
  %v1087 = vadd.f32 %v1085, %v1086
  %v1088 = vadd.f32 %v1042, %v1043
  %v1089 = vrot.slane %v1088, 4
  %v1090 = vadd.f32 %v1088, %v1089
  %v1091 = vrot.slane %v1090, 2
  %v1092 = vadd.f32 %v1090, %v1091
  %v1093 = vrot.slane %v1092, 1
  %v1094 = vadd.f32 %v1092, %v1093
  %v1095 = vadd.f32 %v1044, %v1045
  %v1096 = vrot.slane %v1095, 4
  %v1097 = vadd.f32 %v1095, %v1096
  %v1098 = vrot.slane %v1097, 2
  %v1099 = vadd.f32 %v1097, %v1098
  %v1100 = vrot.slane %v1099, 1
  %v1101 = vadd.f32 %v1099, %v1100
  %v1102 = vrcp.pop 16.0
  %v1103 = vmul.f32 16.0, %v1102
  %v1104 = vsub.f32 1.0, %v1103
  %v1105 = vmul.f32 %v1102, %v1104
  %v1106 = vadd.f32 %v1102, %v1105
  %vm1107 = vweird.f32 %v1102
  %v1108 = vsel %vm1107, %v1102, %v1106
  %v1109 = vmul.f32 %v1052, %v1108
  %v1110 = vmul.f32 %v1059, %v1108
  %v1111 = vmul.f32 %v1066, %v1108
  %v1112 = vmul.f32 %v1073, %v1108
  %v1113 = vmul.f32 %v1080, %v1108
  %v1114 = vmul.f32 %v1087, %v1108
  %v1115 = vmul.f32 %v1094, %v1108
  %v1116 = vmul.f32 %v1101, %v1108
  %v1117 = vpack.c.bf16 %v1109, %v1109
  %v1118 = vpack.c.bf16 %v1110, %v1110
  %v1119 = vpack.c.bf16 %v1111, %v1111
  %v1120 = vpack.c.bf16 %v1112, %v1112
  %v1121 = vpack.c.bf16 %v1113, %v1113
  %v1122 = vpack.c.bf16 %v1114, %v1114
  %v1123 = vpack.c.bf16 %v1115, %v1115
  %v1124 = vpack.c.bf16 %v1116, %v1116
  %v1125 = vld [vmem:[%s3] sm:$0xf]
  %v1126 = vld [vmem:[%s3 + $0x4] sm:$0xf]
  %v1127 = vld [vmem:[%s3 + $0x8] sm:$0xf]
  %v1128 = vld [vmem:[%s3 + $0xc] sm:$0xf]
  %v1129 = vld [vmem:[%s3 + $0x10] sm:$0xf]
  %v1130 = vld [vmem:[%s3 + $0x14] sm:$0xf]
  %v1131 = vld [vmem:[%s3 + $0x18] sm:$0xf]
  %v1132 = vld [vmem:[%s3 + $0x1c] sm:$0xf]
  %v1133 = vld [vmem:[%s3 + $0x20] sm:$0xf]
  %v1134 = vld [vmem:[%s3 + $0x24] sm:$0xf]
  %v1135 = vld [vmem:[%s3 + $0x28] sm:$0xf]
  %v1136 = vld [vmem:[%s3 + $0x2c] sm:$0xf]
  %v1137 = vld [vmem:[%s3 + $0x30] sm:$0xf]
  %v1138 = vld [vmem:[%s3 + $0x34] sm:$0xf]
  %v1139 = vld [vmem:[%s3 + $0x38] sm:$0xf]
  %v1140 = vld [vmem:[%s3 + $0x3c] sm:$0xf]
  %v1141 = vld [vmem:[%s4] sm:$0x1]
  %v1143 = vperm.slane %v1141, 0
  %v1153 = vunpack.c.l.b16 %v1117
  %v1154 = vunpack.c.l.b16 %v1118
  %v1155 = vunpack.c.l.b16 %v1119
  %v1156 = vunpack.c.l.b16 %v1120
  %v1157 = vunpack.c.l.b16 %v1121
  %v1158 = vunpack.c.l.b16 %v1122
  %v1159 = vunpack.c.l.b16 %v1123
  %v1160 = vunpack.c.l.b16 %v1124
  %vm1161 = vcmask 1041409
  %v1162 = vsel %vm1161, %v1154, %v1153
  %vm1163 = vcmask 1042434
  %v1164 = vsel %vm1163, %v1155, %v1162
  %vm1165 = vcmask 1043459
  %v1166 = vsel %vm1165, %v1156, %v1164
  %vm1167 = vcmask 1044484
  %v1168 = vsel %vm1167, %v1157, %v1166
  %vm1169 = vcmask 1045509
  %v1170 = vsel %vm1169, %v1158, %v1168
  %vm1171 = vcmask 1046534
  %v1172 = vsel %vm1171, %v1159, %v1170
  %vm1173 = vcmask 1047559
  %v1174 = vsel %vm1173, %v1160, %v1172
  %v1175 = vpack.c.b16 %v1174, %v1174
  %v1193 = vunpack.c.l.b16 %v1125
  %v1194 = vunpack.c.l.b16 %v1126
  %v1195 = vunpack.c.l.b16 %v1127
  %v1196 = vunpack.c.l.b16 %v1128
  %v1197 = vunpack.c.l.b16 %v1129
  %v1198 = vunpack.c.l.b16 %v1130
  %v1199 = vunpack.c.l.b16 %v1131
  %v1200 = vunpack.c.l.b16 %v1132
  %v1201 = vunpack.c.l.b16 %v1133
  %v1202 = vunpack.c.l.b16 %v1134
  %v1203 = vunpack.c.l.b16 %v1135
  %v1204 = vunpack.c.l.b16 %v1136
  %v1205 = vunpack.c.l.b16 %v1137
  %v1206 = vunpack.c.l.b16 %v1138
  %v1207 = vunpack.c.l.b16 %v1139
  %v1208 = vunpack.c.l.b16 %v1140
  %v1209 = vpack.c.b16 %v1194, %v1193
  %v1210 = vpack.c.b16 %v1196, %v1195
  %v1211 = vpack.c.b16 %v1198, %v1197
  %v1212 = vpack.c.b16 %v1200, %v1199
  %v1213 = vpack.c.b16 %v1202, %v1201
  %v1214 = vpack.c.b16 %v1204, %v1203
  %v1215 = vpack.c.b16 %v1206, %v1205
  %v1216 = vpack.c.b16 %v1208, %v1207
  %1225 = vmatpush.bf16.msra.mxu0 %v1216
  %1226 = vmatpush.bf16.msra.mxu0 %v1215
  %1227 = vmatpush.bf16.msra.mxu0 %v1214
  %1228 = vmatpush.bf16.msra.mxu0 %v1213
  %1229 = vmatpush.bf16.msra.mxu0 %v1212
  %1230 = vmatpush.bf16.msra.mxu0 %v1211
  %1231 = vmatpush.bf16.msra.mxu0 %v1210
  %1232 = vmatpush.bf16.msra.mxu0 %v1209
  %1233 = vmatmul.bf16.gmra.mxu0 %v1175
  %v1234 = vpop.f32.mrf.mxu0
  %v1235 = vadd.f32 %v1143, %v1234
  %v1236 = vpop.f32.mrf.mxu0
  %1237 = vdwg.mxu0
  %v1238 = vpack.c.bf16 %v1235, %v1235
  %v1239 = vld [vmem:[%s5] sm:$0xff]
  %v1240 = vld [vmem:[%s5 + $0x8] sm:$0xf]
  %v1241 = vld [vmem:[%s5 + $0xc] sm:$0xff]
  %v1242 = vld [vmem:[%s5 + $0x14] sm:$0xf]
  %v1243 = vld [vmem:[%s5 + $0x18] sm:$0xff]
  %v1244 = vld [vmem:[%s5 + $0x20] sm:$0xf]
  %v1245 = vld [vmem:[%s5 + $0x24] sm:$0xff]
  %v1246 = vld [vmem:[%s5 + $0x2c] sm:$0xf]
  %v1247 = vld [vmem:[%s5 + $0x30] sm:$0xff]
  %v1248 = vld [vmem:[%s5 + $0x38] sm:$0xf]
  %v1249 = vld [vmem:[%s5 + $0x3c] sm:$0xff]
  %v1250 = vld [vmem:[%s5 + $0x44] sm:$0xf]
  %v1251 = vld [vmem:[%s5 + $0x48] sm:$0xff]
  %v1252 = vld [vmem:[%s5 + $0x50] sm:$0xf]
  %v1253 = vld [vmem:[%s5 + $0x54] sm:$0xff]
  %v1254 = vld [vmem:[%s5 + $0x5c] sm:$0xf]
  %v1255 = vld [vmem:[%s5 + $0x60] sm:$0xff]
  %v1256 = vld [vmem:[%s5 + $0x68] sm:$0xf]
  %v1257 = vld [vmem:[%s5 + $0x6c] sm:$0xff]
  %v1258 = vld [vmem:[%s5 + $0x74] sm:$0xf]
  %v1259 = vld [vmem:[%s5 + $0x78] sm:$0xff]
  %v1260 = vld [vmem:[%s5 + $0x80] sm:$0xf]
  %v1261 = vld [vmem:[%s5 + $0x84] sm:$0xff]
  %v1262 = vld [vmem:[%s5 + $0x8c] sm:$0xf]
  %v1263 = vld [vmem:[%s5 + $0x90] sm:$0xff]
  %v1264 = vld [vmem:[%s5 + $0x98] sm:$0xf]
  %v1265 = vld [vmem:[%s5 + $0x9c] sm:$0xff]
  %v1266 = vld [vmem:[%s5 + $0xa4] sm:$0xf]
  %v1267 = vld [vmem:[%s5 + $0xa8] sm:$0xff]
  %v1268 = vld [vmem:[%s5 + $0xb0] sm:$0xf]
  %v1269 = vld [vmem:[%s5 + $0xb4] sm:$0xff]
  %v1270 = vld [vmem:[%s5 + $0xbc] sm:$0xf]
  %v1303 = vunpack.c.l.b16 %v1239
  %v1304 = vunpack.c.h.b16 %v1239
  %v1305 = vunpack.c.l.b16 %v1240
  %v1306 = vunpack.c.l.b16 %v1241
  %v1307 = vunpack.c.h.b16 %v1241
  %v1308 = vunpack.c.l.b16 %v1242
  %v1309 = vunpack.c.l.b16 %v1243
  %v1310 = vunpack.c.h.b16 %v1243
  %v1311 = vunpack.c.l.b16 %v1244
  %v1312 = vunpack.c.l.b16 %v1245
  %v1313 = vunpack.c.h.b16 %v1245
  %v1314 = vunpack.c.l.b16 %v1246
  %v1315 = vunpack.c.l.b16 %v1247
  %v1316 = vunpack.c.h.b16 %v1247
  %v1317 = vunpack.c.l.b16 %v1248
  %v1318 = vunpack.c.l.b16 %v1249
  %v1319 = vunpack.c.h.b16 %v1249
  %v1320 = vunpack.c.l.b16 %v1250
  %v1321 = vunpack.c.l.b16 %v1251
  %v1322 = vunpack.c.h.b16 %v1251
  %v1323 = vunpack.c.l.b16 %v1252
  %v1324 = vunpack.c.l.b16 %v1253
  %v1325 = vunpack.c.h.b16 %v1253
  %v1326 = vunpack.c.l.b16 %v1254
  %v1327 = vunpack.c.l.b16 %v1255
  %v1328 = vunpack.c.h.b16 %v1255
  %v1329 = vunpack.c.l.b16 %v1256
  %v1330 = vunpack.c.l.b16 %v1257
  %v1331 = vunpack.c.h.b16 %v1257
  %v1332 = vunpack.c.l.b16 %v1258
  %v1333 = vunpack.c.l.b16 %v1259
  %v1334 = vunpack.c.h.b16 %v1259
  %v1335 = vunpack.c.l.b16 %v1260
  %v1336 = vunpack.c.l.b16 %v1261
  %v1337 = vunpack.c.h.b16 %v1261
  %v1338 = vunpack.c.l.b16 %v1262
  %v1339 = vunpack.c.l.b16 %v1263
  %v1340 = vunpack.c.h.b16 %v1263
  %v1341 = vunpack.c.l.b16 %v1264
  %v1342 = vunpack.c.l.b16 %v1265
  %v1343 = vunpack.c.h.b16 %v1265
  %v1344 = vunpack.c.l.b16 %v1266
  %v1345 = vunpack.c.l.b16 %v1267
  %v1346 = vunpack.c.h.b16 %v1267
  %v1347 = vunpack.c.l.b16 %v1268
  %v1348 = vunpack.c.l.b16 %v1269
  %v1349 = vunpack.c.h.b16 %v1269
  %v1350 = vunpack.c.l.b16 %v1270
  %v1351 = vpack.c.b16 %v1306, %v1303
  %v1352 = vpack.c.b16 %v1307, %v1304
  %v1353 = vpack.c.b16 %v1308, %v1305
  %v1354 = vpack.c.b16 %v1312, %v1309
  %v1355 = vpack.c.b16 %v1313, %v1310
  %v1356 = vpack.c.b16 %v1314, %v1311
  %v1357 = vpack.c.b16 %v1318, %v1315
  %v1358 = vpack.c.b16 %v1319, %v1316
  %v1359 = vpack.c.b16 %v1320, %v1317
  %v1360 = vpack.c.b16 %v1324, %v1321
  %v1361 = vpack.c.b16 %v1325, %v1322
  %v1362 = vpack.c.b16 %v1326, %v1323
  %v1363 = vpack.c.b16 %v1330, %v1327
  %v1364 = vpack.c.b16 %v1331, %v1328
  %v1365 = vpack.c.b16 %v1332, %v1329
  %v1366 = vpack.c.b16 %v1336, %v1333
  %v1367 = vpack.c.b16 %v1337, %v1334
  %v1368 = vpack.c.b16 %v1338, %v1335
  %v1369 = vpack.c.b16 %v1342, %v1339
  %v1370 = vpack.c.b16 %v1343, %v1340
  %v1371 = vpack.c.b16 %v1344, %v1341
  %v1372 = vpack.c.b16 %v1348, %v1345
  %v1373 = vpack.c.b16 %v1349, %v1346
  %v1374 = vpack.c.b16 %v1350, %v1347
  %1399 = vmatpush.bf16.msra.mxu0 %v1372
  %1400 = vmatpush.bf16.msra.mxu0 %v1369
  %1401 = vmatpush.bf16.msra.mxu0 %v1366
  %1402 = vmatpush.bf16.msra.mxu0 %v1363
  %1403 = vmatpush.bf16.msra.mxu0 %v1360
  %1404 = vmatpush.bf16.msra.mxu0 %v1357
  %1405 = vmatpush.bf16.msra.mxu0 %v1354
  %1406 = vmatpush.bf16.msra.mxu0 %v1351
  %1407 = vmatmul.bf16.gmra.mxu0 %v1238
  %v1408 = vpop.f32.mrf.mxu0
  %v1409 = vadd.f32 0.0, %v1408
  %v1410 = vpop.f32.mrf.mxu0
  %1411 = vdwg.mxu0
  %1412 = vmatpush.bf16.msra.mxu0 %v1373
  %1413 = vmatpush.bf16.msra.mxu0 %v1370
  %1414 = vmatpush.bf16.msra.mxu0 %v1367
  %1415 = vmatpush.bf16.msra.mxu0 %v1364
  %1416 = vmatpush.bf16.msra.mxu0 %v1361
  %1417 = vmatpush.bf16.msra.mxu0 %v1358
  %1418 = vmatpush.bf16.msra.mxu0 %v1355
  %1419 = vmatpush.bf16.msra.mxu0 %v1352
  %1420 = vmatmul.bf16.gmra.mxu0 %v1238
  %v1421 = vpop.f32.mrf.mxu0
  %v1422 = vadd.f32 0.0, %v1421
  %v1423 = vpop.f32.mrf.mxu0
  %1424 = vdwg.mxu0
  %1425 = vmatpush.bf16.msra.mxu0 %v1374
  %1426 = vmatpush.bf16.msra.mxu0 %v1371
  %1427 = vmatpush.bf16.msra.mxu0 %v1368
  %1428 = vmatpush.bf16.msra.mxu0 %v1365
  %1429 = vmatpush.bf16.msra.mxu0 %v1362
  %1430 = vmatpush.bf16.msra.mxu0 %v1359
  %1431 = vmatpush.bf16.msra.mxu0 %v1356
  %1432 = vmatpush.bf16.msra.mxu0 %v1353
  %1433 = vmatmul.bf16.gmra.mxu0 %v1238
  %v1434 = vpop.f32.mrf.mxu0
  %v1435 = vadd.f32 0.0, %v1434
  %v1436 = vpop.f32.mrf.mxu0
  %1437 = vdwg.mxu0
  %v1439 = vrot.slane %v1409, 4
  %v1442 = vrot.slane %v1422, 4
  %v1445 = vrot.slane %v1435, 4
  %1446 = vmatpush.xpose.msra.mxu0 0.0
  %1447 = vmatpush.xpose.msra.mxu0 0.0
  %1448 = vmatpush.xpose.msra.mxu0 0.0
  %1449 = vmatpush.xpose.msra.mxu0 0.0
  %1450 = vmatpush.xpose.msra.mxu0 0.0
  %1451 = vmatpush.xpose.msra.mxu0 0.0
  %1452 = vmatpush.xpose.msra.mxu0 0.0
  %1453 = vmatpush.xpose.msra.mxu0 0.0
  %1454 = vmatpush.xpose.msra.mxu0 0.0
  %1455 = vmatpush.xpose.msra.mxu0 0.0
  %1456 = vmatpush.xpose.msra.mxu0 0.0
  %1457 = vmatpush.xpose.msra.mxu0 0.0
  %1458 = vmatpush.xpose.msra.mxu0 0.0
  %1459 = vmatpush.xpose.msra.mxu0 0.0
  %1460 = vmatpush.xpose.msra.mxu0 0.0
  %1461 = vmatpush.xpose.msra.mxu0 %v1422
  %1462 = vmatmul.f32.gmra.mxu0 %v1409
  %v1463 = vpop.f32.mrf.mxu0
  %v1464 = vadd.f32 0.0, %v1463
  %1465 = vdwg.mxu0
  %1466 = vmatpush.xpose.msra.mxu0 0.0
  %1467 = vmatpush.xpose.msra.mxu0 0.0
  %1468 = vmatpush.xpose.msra.mxu0 0.0
  %1469 = vmatpush.xpose.msra.mxu0 0.0
  %1470 = vmatpush.xpose.msra.mxu0 0.0
  %1471 = vmatpush.xpose.msra.mxu0 0.0
  %1472 = vmatpush.xpose.msra.mxu0 0.0
  %1473 = vmatpush.xpose.msra.mxu0 0.0
  %1474 = vmatpush.xpose.msra.mxu0 0.0
  %1475 = vmatpush.xpose.msra.mxu0 0.0
  %1476 = vmatpush.xpose.msra.mxu0 0.0
  %1477 = vmatpush.xpose.msra.mxu0 0.0
  %1478 = vmatpush.xpose.msra.mxu0 0.0
  %1479 = vmatpush.xpose.msra.mxu0 0.0
  %1480 = vmatpush.xpose.msra.mxu0 0.0
  %1481 = vmatpush.xpose.msra.mxu0 %v1442
  %1482 = vmatmul.f32.gmra.mxu0 %v1439
  %v1483 = vpop.f32.mrf.mxu0
  %v1484 = vadd.f32 0.0, %v1483
  %1485 = vdwg.mxu0
  %v1486 = vmul.f32 %v1464, 0.088388346
  %v1487 = vmul.f32 %v1484, 0.088388346
  %vm1488 = vcmask 27648
  %v1489 = vsel %vm1488, %v1486, -inf
  %1490 = vmax.xlane.f32.xlu0 %v1489
  %v1491 = vpop.xlane.xlu0 %1490
  %v1492 = vsel %vm1488, %v1487, -inf
  %1493 = vmax.xlane.f32.xlu0 %v1492
  %v1494 = vpop.xlane.xlu0 %1493
  %v1495 = vsub.f32 %v1486, %v1491
  %v1496 = vsub.f32 %v1487, %v1494
  %v1497 = vmul.f32 %v1495, 1.442695
  %v1498 = vpow.pop %v1497
  %v1499 = vmul.f32 %v1496, 1.442695
  %v1500 = vpow.pop %v1499
  %v1501 = vsel %vm1488, %v1498, 0.0
  %1502 = vadd.xlane.f32.xlu0 %v1501
  %v1503 = vpop.xlane.xlu0 %1502
  %v1504 = vsel %vm1488, %v1500, 0.0
  %1505 = vadd.xlane.f32.xlu0 %v1504
  %v1506 = vpop.xlane.xlu0 %1505
  %v1507 = vrcp.pop %v1503
  %v1508 = vmul.f32 %v1503, %v1507
  %v1509 = vsub.f32 1.0, %v1508
  %v1510 = vmul.f32 %v1507, %v1509
  %v1511 = vadd.f32 %v1507, %v1510
  %vm1512 = vweird.f32 %v1503
  %vm1513 = vweird.f32 %v1507
  %vm1514 = vmor %vm1512, %vm1513
  %v1515 = vsel %vm1514, %v1507, %v1511
  %v1516 = vand.u32 2147483647, %v1503
  %vm1517 = vcmp.eq.f32.partialorder %v1516, 8.507059e+37
  %v1518 = vand.u32 %v1503, 2147483648
  %v1519 = vor.u32 1.1754944e-38, %v1518
  %v1520 = vsel %vm1517, %v1519, %v1515
  %v1521 = vmul.f32 %v1498, %v1520
  %v1522 = vrcp.pop %v1506
  %v1523 = vmul.f32 %v1506, %v1522
  %v1524 = vsub.f32 1.0, %v1523
  %v1525 = vmul.f32 %v1522, %v1524
  %v1526 = vadd.f32 %v1522, %v1525
  %vm1527 = vweird.f32 %v1506
  %vm1528 = vweird.f32 %v1522
  %vm1529 = vmor %vm1527, %vm1528
  %v1530 = vsel %vm1529, %v1522, %v1526
  %v1531 = vand.u32 2147483647, %v1506
  %vm1532 = vcmp.eq.f32.partialorder %v1531, 8.507059e+37
  %v1533 = vand.u32 %v1506, 2147483648
  %v1534 = vor.u32 1.1754944e-38, %v1533
  %v1535 = vsel %vm1532, %v1534, %v1530
  %v1536 = vmul.f32 %v1500, %v1535
  %vm1537 = vcmask 31744
  %v1539 = vsel %vm1537, %v1521, 0
  %vm1541 = vcmask 1043456
  %v1542 = vsel %vm1541, %v1435, 0
  %1544 = vmatpush.msra.mxu0 0.0
  %1545 = vmatpush.msra.mxu0 0.0
  %1546 = vmatpush.msra.mxu0 0.0
  %1547 = vmatpush.msra.mxu0 0.0
  %1548 = vmatpush.msra.mxu0 0.0
  %1549 = vmatpush.msra.mxu0 0.0
  %1550 = vmatpush.msra.mxu0 0.0
  %1551 = vmatpush.msra.mxu0 0.0
  %1552 = vmatpush.msra.mxu0 0.0
  %1553 = vmatpush.msra.mxu0 0.0
  %1554 = vmatpush.msra.mxu0 0.0
  %1555 = vmatpush.msra.mxu0 0.0
  %1556 = vmatpush.msra.mxu0 0.0
  %1557 = vmatpush.msra.mxu0 0.0
  %1558 = vmatpush.msra.mxu0 0.0
  %1559 = vmatpush.msra.mxu0 %v1542
  %1560 = vmatmul.f32.gmra.mxu0 %v1539
  %v1561 = vpop.f32.mrf.mxu0
  %v1562 = vadd.f32 0.0, %v1561
  %1563 = vdwg.mxu0
  %v1565 = vsel %vm1537, %v1536, 0
  %v1567 = vsel %vm1541, %v1445, 0
  %1569 = vmatpush.msra.mxu0 0.0
  %1570 = vmatpush.msra.mxu0 0.0
  %1571 = vmatpush.msra.mxu0 0.0
  %1572 = vmatpush.msra.mxu0 0.0
  %1573 = vmatpush.msra.mxu0 0.0
  %1574 = vmatpush.msra.mxu0 0.0
  %1575 = vmatpush.msra.mxu0 0.0
  %1576 = vmatpush.msra.mxu0 0.0
  %1577 = vmatpush.msra.mxu0 0.0
  %1578 = vmatpush.msra.mxu0 0.0
  %1579 = vmatpush.msra.mxu0 0.0
  %1580 = vmatpush.msra.mxu0 0.0
  %1581 = vmatpush.msra.mxu0 0.0
  %1582 = vmatpush.msra.mxu0 0.0
  %1583 = vmatpush.msra.mxu0 0.0
  %1584 = vmatpush.msra.mxu0 %v1567
  %1585 = vmatmul.f32.gmra.mxu0 %v1565
  %v1586 = vpop.f32.mrf.mxu0
  %v1587 = vadd.f32 0.0, %v1586
  %1588 = vdwg.mxu0
  %1591 = vst [vmem:[#allocation1] ss:$2 sm:$0xff] %v1562
  %s1592 = scalar_lea.vmem [#allocation1], 1
  %1593 = vst [vmem:[%s1592] ss:$2 sm:$0xff] %v1587
  %v1594 = vld.sshfl [vmem:[#allocation1] sm:$0xff pattern:$0x75316420]
  %v1596 = vpack.c.bf16 %v1594, %v1594
  %v1597 = vld [vmem:[%s6] sm:$0xf]
  %v1598 = vld [vmem:[%s6 + $0x4] sm:$0xf]
  %v1599 = vld [vmem:[%s6 + $0x8] sm:$0xf]
  %v1600 = vld [vmem:[%s6 + $0xc] sm:$0xf]
  %v1601 = vld [vmem:[%s6 + $0x10] sm:$0xf]
  %v1602 = vld [vmem:[%s6 + $0x14] sm:$0xf]
  %v1603 = vld [vmem:[%s6 + $0x18] sm:$0xf]
  %v1604 = vld [vmem:[%s6 + $0x1c] sm:$0xf]
  %v1605 = vld [vmem:[%s6 + $0x20] sm:$0xf]
  %v1606 = vld [vmem:[%s6 + $0x24] sm:$0xf]
  %v1607 = vld [vmem:[%s6 + $0x28] sm:$0xf]
  %v1608 = vld [vmem:[%s6 + $0x2c] sm:$0xf]
  %v1609 = vld [vmem:[%s6 + $0x30] sm:$0xf]
  %v1610 = vld [vmem:[%s6 + $0x34] sm:$0xf]
  %v1611 = vld [vmem:[%s6 + $0x38] sm:$0xf]
  %v1612 = vld [vmem:[%s6 + $0x3c] sm:$0xf]
  %v1629 = vunpack.c.l.b16 %v1597
  %v1630 = vunpack.c.l.b16 %v1598
  %v1631 = vunpack.c.l.b16 %v1599
  %v1632 = vunpack.c.l.b16 %v1600
  %v1633 = vunpack.c.l.b16 %v1601
  %v1634 = vunpack.c.l.b16 %v1602
  %v1635 = vunpack.c.l.b16 %v1603
  %v1636 = vunpack.c.l.b16 %v1604
  %v1637 = vunpack.c.l.b16 %v1605
  %v1638 = vunpack.c.l.b16 %v1606
  %v1639 = vunpack.c.l.b16 %v1607
  %v1640 = vunpack.c.l.b16 %v1608
  %v1641 = vunpack.c.l.b16 %v1609
  %v1642 = vunpack.c.l.b16 %v1610
  %v1643 = vunpack.c.l.b16 %v1611
  %v1644 = vunpack.c.l.b16 %v1612
  %v1645 = vpack.c.b16 %v1630, %v1629
  %v1646 = vpack.c.b16 %v1632, %v1631
  %v1647 = vpack.c.b16 %v1634, %v1633
  %v1648 = vpack.c.b16 %v1636, %v1635
  %v1649 = vpack.c.b16 %v1638, %v1637
  %v1650 = vpack.c.b16 %v1640, %v1639
  %v1651 = vpack.c.b16 %v1642, %v1641
  %v1652 = vpack.c.b16 %v1644, %v1643
  %1661 = vmatpush.bf16.msra.mxu0 %v1652
  %1662 = vmatpush.bf16.msra.mxu0 %v1651
  %1663 = vmatpush.bf16.msra.mxu0 %v1650
  %1664 = vmatpush.bf16.msra.mxu0 %v1649
  %1665 = vmatpush.bf16.msra.mxu0 %v1648
  %1666 = vmatpush.bf16.msra.mxu0 %v1647
  %1667 = vmatpush.bf16.msra.mxu0 %v1646
  %1668 = vmatpush.bf16.msra.mxu0 %v1645
  %1669 = vmatmul.bf16.gmra.mxu0 %v1596
  %v1670 = vpop.f32.mrf.mxu0
  %v1671 = vadd.f32 %v1235, %v1670
  %v1672 = vpop.f32.mrf.mxu0
  %1673 = vdwg.mxu0
  %v1675 = vrot.slane %v1671, 4
  %v1677 = vsel %vm1541, %v1671, 0.0
  %v1678 = vrot.slane %v1677, 4
  %v1679 = vadd.f32 %v1677, %v1678
  %v1680 = vrot.slane %v1679, 2
  %v1681 = vadd.f32 %v1679, %v1680
  %v1682 = vrot.slane %v1681, 1
  %v1683 = vadd.f32 %v1681, %v1682
  %v1684 = vsel %vm1541, %v1675, 0.0
  %v1685 = vrot.slane %v1684, 4
  %v1686 = vadd.f32 %v1684, %v1685
  %v1687 = vrot.slane %v1686, 2
  %v1688 = vadd.f32 %v1686, %v1687
  %v1689 = vrot.slane %v1688, 1
  %v1690 = vadd.f32 %v1688, %v1689
  %v1691 = vrcp.pop 4.0
  %v1692 = vmul.f32 4.0, %v1691
  %v1693 = vsub.f32 1.0, %v1692
  %v1694 = vmul.f32 %v1691, %v1693
  %v1695 = vadd.f32 %v1691, %v1694
  %vm1696 = vweird.f32 %v1691
  %v1697 = vsel %vm1696, %v1691, %v1695
  %v1698 = vmul.f32 %v1683, %v1697
  %v1699 = vmul.f32 %v1690, %v1697
  %v1700 = vpack.c.bf16 %v1698, %v1698
  %v1701 = vpack.c.bf16 %v1699, %v1699
  %v1702 = vld [vmem:[%s7] sm:$0xf]
  %v1703 = vld [vmem:[%s7 + $0x4] sm:$0xf]
  %v1704 = vld [vmem:[%s7 + $0x8] sm:$0xf]
  %v1705 = vld [vmem:[%s7 + $0xc] sm:$0xf]
  %v1706 = vld [vmem:[%s7 + $0x10] sm:$0xf]
  %v1707 = vld [vmem:[%s7 + $0x14] sm:$0xf]
  %v1708 = vld [vmem:[%s7 + $0x18] sm:$0xf]
  %v1709 = vld [vmem:[%s7 + $0x1c] sm:$0xf]
  %v1710 = vld [vmem:[%s7 + $0x20] sm:$0xf]
  %v1711 = vld [vmem:[%s7 + $0x24] sm:$0xf]
  %v1712 = vld [vmem:[%s7 + $0x28] sm:$0xf]
  %v1713 = vld [vmem:[%s7 + $0x2c] sm:$0xf]
  %v1714 = vld [vmem:[%s7 + $0x30] sm:$0xf]
  %v1715 = vld [vmem:[%s7 + $0x34] sm:$0xf]
  %v1716 = vld [vmem:[%s7 + $0x38] sm:$0xf]
  %v1717 = vld [vmem:[%s7 + $0x3c] sm:$0xf]
  %v1718 = vld [vmem:[%s8] sm:$0x1]
  %v1720 = vperm.slane %v1718, 0
  %v1724 = vunpack.c.l.b16 %v1700
  %v1725 = vunpack.c.l.b16 %v1701
  %v1726 = vsel %vm1161, %v1725, %v1724
  %v1727 = vpack.c.b16 %v1726, %v1726
  %v1745 = vunpack.c.l.b16 %v1702
  %v1746 = vunpack.c.l.b16 %v1703
  %v1747 = vunpack.c.l.b16 %v1704
  %v1748 = vunpack.c.l.b16 %v1705
  %v1749 = vunpack.c.l.b16 %v1706
  %v1750 = vunpack.c.l.b16 %v1707
  %v1751 = vunpack.c.l.b16 %v1708
  %v1752 = vunpack.c.l.b16 %v1709
  %v1753 = vunpack.c.l.b16 %v1710
  %v1754 = vunpack.c.l.b16 %v1711
  %v1755 = vunpack.c.l.b16 %v1712
  %v1756 = vunpack.c.l.b16 %v1713
  %v1757 = vunpack.c.l.b16 %v1714
  %v1758 = vunpack.c.l.b16 %v1715
  %v1759 = vunpack.c.l.b16 %v1716
  %v1760 = vunpack.c.l.b16 %v1717
  %v1761 = vpack.c.b16 %v1746, %v1745
  %v1762 = vpack.c.b16 %v1748, %v1747
  %v1763 = vpack.c.b16 %v1750, %v1749
  %v1764 = vpack.c.b16 %v1752, %v1751
  %v1765 = vpack.c.b16 %v1754, %v1753
  %v1766 = vpack.c.b16 %v1756, %v1755
  %v1767 = vpack.c.b16 %v1758, %v1757
  %v1768 = vpack.c.b16 %v1760, %v1759
  %1777 = vmatpush.bf16.msra.mxu0 %v1768
  %1778 = vmatpush.bf16.msra.mxu0 %v1767
  %1779 = vmatpush.bf16.msra.mxu0 %v1766
  %1780 = vmatpush.bf16.msra.mxu0 %v1765
  %1781 = vmatpush.bf16.msra.mxu0 %v1764
  %1782 = vmatpush.bf16.msra.mxu0 %v1763
  %1783 = vmatpush.bf16.msra.mxu0 %v1762
  %1784 = vmatpush.bf16.msra.mxu0 %v1761
  %1785 = vmatmul.bf16.gmra.mxu0 %v1727
  %v1786 = vpop.f32.mrf.mxu0
  %v1787 = vadd.f32 %v1720, %v1786
  %v1788 = vpop.f32.mrf.mxu0
  %1789 = vdwg.mxu0
  %1790 = vst [vmem:[%s9] sm:$0x3] %v1787
  // Predicated region
  $region38: #{moco_forward.1} parent=0 // pred_check
    _
  $region39: #{moco_forward.1} parent=0 // pred_check_branch
    %1792 = sbr.rel (0) target = $region41
  $region40: #{moco_forward.1} parent=0 // pred_region
    _
  $region41: #{moco_forward.1} parent=0 // pred_fallthru
    _
  // Predicated region
  $region42: #{moco_forward.1} parent=0 // pred_check
    _
  $region43: #{moco_forward.1} parent=0 // pred_check_branch
    %1794 = sbr.rel (0) target = $region45
  $region44: #{moco_forward.1} parent=0 // pred_region
    _
  $region45: #{moco_forward.1} parent=0 // pred_fallthru
    _

</llo_original>
